<compile_context>
chip_gen: v7x
topology: tpu7x:2x2x1
jax: 0.10.0
libtpu: 0.0.40
codegen_flags: <defaults>
</compile_context>

<pallas_src>
import jax
import jax.numpy as jnp
from jax import lax
from jax.experimental import pallas as pl
from jax.experimental.pallas import tpu as pltpu


def _make_fasttext_kernel(tb, seq_len):
    """Kernel closure over static tile/shape constants."""

    def kernel(wid_ref, bid_ref, tid_ref,            # scalar prefetch (SMEM), [Bp*S] i32
               wtbl_ref, btbl_ref, ttbl_ref,         # VMEM tables, [V, E] f32
               w1w_ref, w1b_ref, w1t_ref,            # fc1 slabs [E, Hp] (1/S folded in)
               b1_ref, w2_ref, b2_ref,               # [1, Hp], [Hp, Cp], [1, Cp]
               out_ref,                              # [tb, Cp]
               roww_ref, rowb_ref, rowt_ref,         # [S, E] gather staging buffers
               aw_ref, ab_ref, at_ref):              # [tb, E] per-table sequence sums
        i = pl.program_id(0)

        def row_body(b, carry):
            base = (i * tb + b) * seq_len

            def tok_body(s, c):
                off = base + s
                # Dynamic row gather from the VMEM-resident tables into the
                # [S, E] staging buffers (one sublane row per token).
                roww_ref[pl.ds(s, 1), :] = wtbl_ref[pl.ds(wid_ref[off], 1), :]
                rowb_ref[pl.ds(s, 1), :] = btbl_ref[pl.ds(bid_ref[off], 1), :]
                rowt_ref[pl.ds(s, 1), :] = ttbl_ref[pl.ds(tid_ref[off], 1), :]
                return c

            lax.fori_loop(0, seq_len, tok_body, 0, unroll=True)

            # One sublane (XLU) reduce per table instead of S serial VALU adds.
            aw_ref[pl.ds(b, 1), :] = jnp.sum(roww_ref[...], axis=0, keepdims=True)
            ab_ref[pl.ds(b, 1), :] = jnp.sum(rowb_ref[...], axis=0, keepdims=True)
            at_ref[pl.ds(b, 1), :] = jnp.sum(rowt_ref[...], axis=0, keepdims=True)
            return carry

        lax.fori_loop(0, tb, row_body, 0)

        # Three K=E dots (MXU-accumulated) replace the lane-misaligned K=3E
        # concat + single dot.  The 1/S of the original mean is in the slabs.
        h = (jnp.dot(aw_ref[...], w1w_ref[...], preferred_element_type=jnp.float32)
             + jnp.dot(ab_ref[...], w1b_ref[...], preferred_element_type=jnp.float32)
             + jnp.dot(at_ref[...], w1t_ref[...], preferred_element_type=jnp.float32)
             + b1_ref[...])
        h = jnp.maximum(h, 0.0)                       # ReLU
        out_ref[...] = (jnp.dot(h, w2_ref[...], preferred_element_type=jnp.float32)
                        + b2_ref[...])

    return kernel


def fasttext_forward(word_ids, bigram_ids, trigram_ids,
                     emb_word, emb_ngram2, emb_ngram3,
                     w1, b1, w2, b2, *, tb=8):
    """word/bigram/trigram ids: [B, S] int32; emb_*: [V, E]; w1: [3E, H]; w2: [H, C].

    For realistic batch sizes raise `tb` toward 128 (v5e) / 256 (v6e, v7x) but
    keep Bp // tb >= 2 so both v7x TensorCores get grid steps.
    """
    B, S = word_ids.shape
    Vw, E = emb_word.shape
    Vn = emb_ngram2.shape[0]
    H = w1.shape[1]
    C = w2.shape[1]

    LANE, SUB = 128, 8
    assert tb % SUB == 0, "batch tile must be a sublane multiple"
    Hp = pl.cdiv(H, LANE) * LANE                  # lane-dense hidden
    Cp = pl.cdiv(C, LANE) * LANE                  # lane-dense logits
    Bp = pl.cdiv(B, tb) * tb                      # batch padded to tile multiple

    # Flattened 1D ids (avoid [Bp, S->128] SMEM lane padding); padded batch
    # rows use index 0 and are sliced off below.
    def pad_flat_ids(ids):
        p = jnp.pad(ids.astype(jnp.int32), ((0, Bp - B), (0, 0)))
        return p.reshape(Bp * S)

    wid = pad_flat_ids(word_ids)
    bid = pad_flat_ids(bigram_ids)
    tid = pad_flat_ids(trigram_ids)

    # fc1 split into three K=E slabs; 1/S of the sequence mean folded in.
    # Zero-padded columns -> padded lanes carry zeros and are sliced off.
    w1f = w1.astype(jnp.float32) / jnp.float32(S)
    w1w = jnp.zeros((E, Hp), jnp.float32).at[:, :H].set(w1f[0 * E:1 * E])
    w1b = jnp.zeros((E, Hp), jnp.float32).at[:, :H].set(w1f[1 * E:2 * E])
    w1t = jnp.zeros((E, Hp), jnp.float32).at[:, :H].set(w1f[2 * E:3 * E])
    b1p = jnp.zeros((1, Hp), jnp.float32).at[:, :H].set(b1.astype(jnp.float32))
    w2p = jnp.zeros((Hp, Cp), jnp.float32).at[:H, :C].set(w2.astype(jnp.float32))
    b2p = jnp.zeros((1, Cp), jnp.float32).at[:, :C].set(b2.astype(jnp.float32))

    # Plain 2-D tables (no [V,1,E] (8,128)-tile blowup); rows gathered with pl.ds.
    wtbl = emb_word.astype(jnp.float32)
    btbl = emb_ngram2.astype(jnp.float32)
    ttbl = emb_ngram3.astype(jnp.float32)

    grid = (Bp // tb,)
    kernel = _make_fasttext_kernel(tb, S)

    grid_spec = pltpu.PrefetchScalarGridSpec(
        num_scalar_prefetch=3,                     # word / bigram / trigram ids -> SMEM
        grid=grid,
        in_specs=[
            # Tables + weights: constant index_map -> VMEM-resident, no per-tile re-DMA.
            pl.BlockSpec((Vw, E), lambda i, *_: (0, 0)),
            pl.BlockSpec((Vn, E), lambda i, *_: (0, 0)),
            pl.BlockSpec((Vn, E), lambda i, *_: (0, 0)),
            pl.BlockSpec((E, Hp), lambda i, *_: (0, 0)),
            pl.BlockSpec((E, Hp), lambda i, *_: (0, 0)),
            pl.BlockSpec((E, Hp), lambda i, *_: (0, 0)),
            pl.BlockSpec((1, Hp), lambda i, *_: (0, 0)),
            pl.BlockSpec((Hp, Cp), lambda i, *_: (0, 0)),
            pl.BlockSpec((1, Cp), lambda i, *_: (0, 0)),
        ],
        out_specs=pl.BlockSpec((tb, Cp), lambda i, *_: (i, 0)),
        scratch_shapes=[
            pltpu.VMEM((S, E), jnp.float32),       # word row staging
            pltpu.VMEM((S, E), jnp.float32),       # bigram row staging
            pltpu.VMEM((S, E), jnp.float32),       # trigram row staging
            pltpu.VMEM((tb, E), jnp.float32),      # word per-row sums
            pltpu.VMEM((tb, E), jnp.float32),      # bigram per-row sums
            pltpu.VMEM((tb, E), jnp.float32),      # trigram per-row sums
        ],
    )

    # VMEM budget computed from the actual resident footprint (tile-padded),
    # x2 for Pallas' default double-buffering of BlockSpec'd inputs, + headroom.
    def _pad(n, m):
        return ((n + m - 1) // m) * m

    table_vmem = 4 * (_pad(Vw, SUB) + 2 * _pad(Vn, SUB)) * _pad(E, LANE)
    weight_vmem = 4 * (3 * _pad(E, SUB) * Hp + SUB * Hp + Hp * Cp + SUB * Cp)
    out_vmem = 4 * tb * Cp
    scratch_vmem = 4 * 3 * (_pad(S, SUB) + tb) * _pad(E, LANE)
    vmem_limit = 2 * (table_vmem + weight_vmem + out_vmem) + scratch_vmem + (4 << 20)
    vmem_limit = int(min(vmem_limit, 100 * 1024 * 1024))

    flops = 2 * Bp * E * Hp * 3 + 2 * Bp * Hp * Cp + 3 * Bp * S * E
    bytes_accessed = (3 * Bp * S * 4                                   # ids
                      + (Vw + 2 * Vn) * E * 4                          # tables
                      + (3 * E * Hp + Hp + Hp * Cp + Cp) * 4           # weights
                      + Bp * Cp * 4)                                   # output

    out = pl.pallas_call(
        kernel,
        grid_spec=grid_spec,
        out_shape=jax.ShapeDtypeStruct((Bp, Cp), jnp.float32),
        compiler_params=pltpu.CompilerParams(
            dimension_semantics=("parallel",),     # batch tiles independent (v7x dual-TC)
            vmem_limit_bytes=vmem_limit),
        cost_estimate=pl.CostEstimate(flops=flops, transcendentals=0,
                                      bytes_accessed=bytes_accessed),
    )(wid, bid, tid, wtbl, btbl, ttbl, w1w, w1b, w1t, b1p, w2p, b2p)

    return out[:B, :C]


def model_forward(x, params):
    """x = (word_ids, seq_len, bigram_ids, trigram_ids); ids are [B, S] int32."""
    word_ids, _, bigram_ids, trigram_ids = x      # seq_len unused, same as PyTorch model
    return fasttext_forward(word_ids, bigram_ids, trigram_ids,
                            params["emb_word"], params["emb_ngram2"],
                            params["emb_ngram3"],
                            params["w1"], params["b1"],
                            params["w2"], params["b2"])


if __name__ == "__main__":
    # Config-equivalent small sizes.
    n_vocab = 100
    n_gram_vocab = 200
    embed = 64
    hidden_size = 32
    num_classes = 5
    B, S = 16, 8                                   # B=16 with tb=8 -> grid of 2 tiles

    key = jax.random.PRNGKey(0)
    keys = jax.random.split(key, 10)

    emb_word_tbl = jax.random.normal(keys[0], (n_vocab, embed), jnp.float32) * 0.1
    # padding_idx = n_vocab - 1 -> zero row (PyTorch nn.Embedding semantics)
    emb_word_tbl = emb_word_tbl.at[n_vocab - 1].set(0.0)
    emb_ngram2_tbl = jax.random.normal(keys[1], (n_gram_vocab, embed), jnp.float32) * 0.1
    emb_ngram3_tbl = jax.random.normal(keys[2], (n_gram_vocab, embed), jnp.float32) * 0.1

    # fc1: Linear(embed*3 -> hidden), stored transposed as [3E, H]
    w1 = jax.random.normal(keys[3], (embed * 3, hidden_size), jnp.float32) * 0.05
    b1 = jax.random.normal(keys[4], (hidden_size,), jnp.float32) * 0.05
    # fc2: Linear(hidden -> num_classes), stored as [H, C]
    w2 = jax.random.normal(keys[5], (hidden_size, num_classes), jnp.float32) * 0.05
    b2 = jax.random.normal(keys[6], (num_classes,), jnp.float32) * 0.05

    params = dict(emb_word=emb_word_tbl, emb_ngram2=emb_ngram2_tbl,
                  emb_ngram3=emb_ngram3_tbl, w1=w1, b1=b1, w2=w2, b2=b2)

    word_ids = jax.random.randint(keys[7], (B, S), 0, n_vocab, dtype=jnp.int32)
    bigram_ids = jax.random.randint(keys[8], (B, S), 0, n_gram_vocab, dtype=jnp.int32)
    trigram_ids = jax.random.randint(keys[9], (B, S), 0, n_gram_vocab, dtype=jnp.int32)
    seq_len = jnp.full((B,), S, dtype=jnp.int32)   # present in x but unused (x[1])

    x = (word_ids, seq_len, bigram_ids, trigram_ids)

    out = model_forward(x, params)
    jax.block_until_ready(out)

    # Pure-JAX reference check (matches the PyTorch forward in eval mode).
    ew = jnp.take(emb_word_tbl, word_ids, axis=0)
    eb = jnp.take(emb_ngram2_tbl, bigram_ids, axis=0)
    et = jnp.take(emb_ngram3_tbl, trigram_ids, axis=0)
    feat = jnp.concatenate([ew, eb, et], axis=-1).mean(axis=1)
    ref = jnp.maximum(feat @ w1 + b1, 0.0) @ w2 + b2

    assert out.shape == (B, num_classes)
    assert jnp.allclose(out, ref, atol=2e-5, rtol=2e-5), "mismatch vs reference"

    print("KERNEL_OK")
</pallas_src>

<mosaic_0001>
module attributes {stable_mosaic.version = 11 : i64} {
  func.func @kernel(%arg0: i32, %arg1: memref<128xi32, #tpu.memory_space<smem>>, %arg2: memref<128xi32, #tpu.memory_space<smem>>, %arg3: memref<128xi32, #tpu.memory_space<smem>>, %arg4: memref<100x64xf32, #tpu.memory_space<vmem>>, %arg5: memref<200x64xf32, #tpu.memory_space<vmem>>, %arg6: memref<200x64xf32, #tpu.memory_space<vmem>>, %arg7: memref<64x128xf32, #tpu.memory_space<vmem>>, %arg8: memref<64x128xf32, #tpu.memory_space<vmem>>, %arg9: memref<64x128xf32, #tpu.memory_space<vmem>>, %arg10: memref<1x128xf32, #tpu.memory_space<vmem>>, %arg11: memref<128x128xf32, #tpu.memory_space<vmem>>, %arg12: memref<1x128xf32, #tpu.memory_space<vmem>>, %arg13: memref<8x128xf32, #tpu.memory_space<vmem>>, %arg14: memref<8x64xf32, #tpu.memory_space<vmem>>, %arg15: memref<8x64xf32, #tpu.memory_space<vmem>>, %arg16: memref<8x64xf32, #tpu.memory_space<vmem>>, %arg17: memref<8x64xf32, #tpu.memory_space<vmem>>, %arg18: memref<8x64xf32, #tpu.memory_space<vmem>>, %arg19: memref<8x64xf32, #tpu.memory_space<vmem>>) attributes {dimension_semantics = [#tpu.dimension_semantics<parallel>], iteration_bounds = array<i64: 2>, scalar_prefetch = 3 : i64, scratch_operands = 6 : i64, tpu.core_type = #tpu.core_type<tc>, window_params = [{pipeline_mode = #tpu.pipeline_mode<synchronous>, transform_indices = @transform_0, window_bounds = array<i64: 100, 64>}, {pipeline_mode = #tpu.pipeline_mode<synchronous>, transform_indices = @transform_1, window_bounds = array<i64: 200, 64>}, {pipeline_mode = #tpu.pipeline_mode<synchronous>, transform_indices = @transform_2, window_bounds = array<i64: 200, 64>}, {pipeline_mode = #tpu.pipeline_mode<synchronous>, transform_indices = @transform_3, window_bounds = array<i64: 64, 128>}, {pipeline_mode = #tpu.pipeline_mode<synchronous>, transform_indices = @transform_4, window_bounds = array<i64: 64, 128>}, {pipeline_mode = #tpu.pipeline_mode<synchronous>, transform_indices = @transform_5, window_bounds = array<i64: 64, 128>}, {pipeline_mode = #tpu.pipeline_mode<synchronous>, transform_indices = @transform_6, window_bounds = array<i64: 1, 128>}, {pipeline_mode = #tpu.pipeline_mode<synchronous>, transform_indices = @transform_7, window_bounds = array<i64: 128, 128>}, {pipeline_mode = #tpu.pipeline_mode<synchronous>, transform_indices = @transform_8, window_bounds = array<i64: 1, 128>}, {transform_indices = @transform_9, window_bounds = array<i64: 8, 128>}]} {
    %c0_i32 = arith.constant 0 : i32
    %c8_i32 = arith.constant 8 : i32
    %0 = arith.addi %c0_i32, %c8_i32 : i32
    %c1_i32 = arith.constant 1 : i32
    scf.for %arg20 = %c0_i32 to %0 step %c1_i32  : i32 {
      %c8_i32_24 = arith.constant 8 : i32
      %23 = arith.muli %arg0, %c8_i32_24 : i32
      %24 = arith.addi %23, %arg20 : i32
      %c8_i32_25 = arith.constant 8 : i32
      %25 = arith.muli %24, %c8_i32_25 : i32
      %c0_i32_26 = arith.constant 0 : i32
      %26 = arith.addi %25, %c0_i32_26 : i32
      %27 = arith.index_cast %26 : i32 to index
      %28 = memref.load %arg1[%27] : memref<128xi32, #tpu.memory_space<smem>>
      %29 = arith.index_cast %28 : i32 to index
      %c0_27 = arith.constant 0 : index
      %30 = vector.load %arg4[%29, %c0_27] : memref<100x64xf32, #tpu.memory_space<vmem>>, vector<1x64xf32>
      %31 = arith.index_cast %c0_i32_26 : i32 to index
      %c0_28 = arith.constant 0 : index
      %32 = vector.load %arg14[%31, %c0_28] : memref<8x64xf32, #tpu.memory_space<vmem>>, vector<1x64xf32>
      tpu.vector_store %arg14[%31, %c0_28], %30 {strides = array<i32>} : memref<8x64xf32, #tpu.memory_space<vmem>>, vector<1x64xf32>,
      %33 = arith.index_cast %26 : i32 to index
      %34 = memref.load %arg2[%33] : memref<128xi32, #tpu.memory_space<smem>>
      %35 = arith.index_cast %34 : i32 to index
      %c0_29 = arith.constant 0 : index
      %36 = vector.load %arg5[%35, %c0_29] : memref<200x64xf32, #tpu.memory_space<vmem>>, vector<1x64xf32>
      %37 = arith.index_cast %c0_i32_26 : i32 to index
      %c0_30 = arith.constant 0 : index
      %38 = vector.load %arg15[%37, %c0_30] : memref<8x64xf32, #tpu.memory_space<vmem>>, vector<1x64xf32>
      tpu.vector_store %arg15[%37, %c0_30], %36 {strides = array<i32>} : memref<8x64xf32, #tpu.memory_space<vmem>>, vector<1x64xf32>,
      %39 = arith.index_cast %26 : i32 to index
      %40 = memref.load %arg3[%39] : memref<128xi32, #tpu.memory_space<smem>>
      %41 = arith.index_cast %40 : i32 to index
      %c0_31 = arith.constant 0 : index
      %42 = vector.load %arg6[%41, %c0_31] : memref<200x64xf32, #tpu.memory_space<vmem>>, vector<1x64xf32>
      %43 = arith.index_cast %c0_i32_26 : i32 to index
      %c0_32 = arith.constant 0 : index
      %44 = vector.load %arg16[%43, %c0_32] : memref<8x64xf32, #tpu.memory_space<vmem>>, vector<1x64xf32>
      tpu.vector_store %arg16[%43, %c0_32], %42 {strides = array<i32>} : memref<8x64xf32, #tpu.memory_space<vmem>>, vector<1x64xf32>,
      %c1_i32_33 = arith.constant 1 : i32
      %45 = arith.addi %25, %c1_i32_33 : i32
      %46 = arith.index_cast %45 : i32 to index
      %47 = memref.load %arg1[%46] : memref<128xi32, #tpu.memory_space<smem>>
      %48 = arith.index_cast %47 : i32 to index
      %c0_34 = arith.constant 0 : index
      %49 = vector.load %arg4[%48, %c0_34] : memref<100x64xf32, #tpu.memory_space<vmem>>, vector<1x64xf32>
      %50 = arith.index_cast %c1_i32_33 : i32 to index
      %c0_35 = arith.constant 0 : index
      %51 = vector.load %arg14[%50, %c0_35] : memref<8x64xf32, #tpu.memory_space<vmem>>, vector<1x64xf32>
      tpu.vector_store %arg14[%50, %c0_35], %49 {strides = array<i32>} : memref<8x64xf32, #tpu.memory_space<vmem>>, vector<1x64xf32>,
      %52 = arith.index_cast %45 : i32 to index
      %53 = memref.load %arg2[%52] : memref<128xi32, #tpu.memory_space<smem>>
      %54 = arith.index_cast %53 : i32 to index
      %c0_36 = arith.constant 0 : index
      %55 = vector.load %arg5[%54, %c0_36] : memref<200x64xf32, #tpu.memory_space<vmem>>, vector<1x64xf32>
      %56 = arith.index_cast %c1_i32_33 : i32 to index
      %c0_37 = arith.constant 0 : index
      %57 = vector.load %arg15[%56, %c0_37] : memref<8x64xf32, #tpu.memory_space<vmem>>, vector<1x64xf32>
      tpu.vector_store %arg15[%56, %c0_37], %55 {strides = array<i32>} : memref<8x64xf32, #tpu.memory_space<vmem>>, vector<1x64xf32>,
      %58 = arith.index_cast %45 : i32 to index
      %59 = memref.load %arg3[%58] : memref<128xi32, #tpu.memory_space<smem>>
      %60 = arith.index_cast %59 : i32 to index
      %c0_38 = arith.constant 0 : index
      %61 = vector.load %arg6[%60, %c0_38] : memref<200x64xf32, #tpu.memory_space<vmem>>, vector<1x64xf32>
      %62 = arith.index_cast %c1_i32_33 : i32 to index
      %c0_39 = arith.constant 0 : index
      %63 = vector.load %arg16[%62, %c0_39] : memref<8x64xf32, #tpu.memory_space<vmem>>, vector<1x64xf32>
      tpu.vector_store %arg16[%62, %c0_39], %61 {strides = array<i32>} : memref<8x64xf32, #tpu.memory_space<vmem>>, vector<1x64xf32>,
      %c2_i32 = arith.constant 2 : i32
      %64 = arith.addi %25, %c2_i32 : i32
      %65 = arith.index_cast %64 : i32 to index
      %66 = memref.load %arg1[%65] : memref<128xi32, #tpu.memory_space<smem>>
      %67 = arith.index_cast %66 : i32 to index
      %c0_40 = arith.constant 0 : index
      %68 = vector.load %arg4[%67, %c0_40] : memref<100x64xf32, #tpu.memory_space<vmem>>, vector<1x64xf32>
      %69 = arith.index_cast %c2_i32 : i32 to index
      %c0_41 = arith.constant 0 : index
      %70 = vector.load %arg14[%69, %c0_41] : memref<8x64xf32, #tpu.memory_space<vmem>>, vector<1x64xf32>
      tpu.vector_store %arg14[%69, %c0_41], %68 {strides = array<i32>} : memref<8x64xf32, #tpu.memory_space<vmem>>, vector<1x64xf32>,
      %71 = arith.index_cast %64 : i32 to index
      %72 = memref.load %arg2[%71] : memref<128xi32, #tpu.memory_space<smem>>
      %73 = arith.index_cast %72 : i32 to index
      %c0_42 = arith.constant 0 : index
      %74 = vector.load %arg5[%73, %c0_42] : memref<200x64xf32, #tpu.memory_space<vmem>>, vector<1x64xf32>
      %75 = arith.index_cast %c2_i32 : i32 to index
      %c0_43 = arith.constant 0 : index
      %76 = vector.load %arg15[%75, %c0_43] : memref<8x64xf32, #tpu.memory_space<vmem>>, vector<1x64xf32>
      tpu.vector_store %arg15[%75, %c0_43], %74 {strides = array<i32>} : memref<8x64xf32, #tpu.memory_space<vmem>>, vector<1x64xf32>,
      %77 = arith.index_cast %64 : i32 to index
      %78 = memref.load %arg3[%77] : memref<128xi32, #tpu.memory_space<smem>>
      %79 = arith.index_cast %78 : i32 to index
      %c0_44 = arith.constant 0 : index
      %80 = vector.load %arg6[%79, %c0_44] : memref<200x64xf32, #tpu.memory_space<vmem>>, vector<1x64xf32>
      %81 = arith.index_cast %c2_i32 : i32 to index
      %c0_45 = arith.constant 0 : index
      %82 = vector.load %arg16[%81, %c0_45] : memref<8x64xf32, #tpu.memory_space<vmem>>, vector<1x64xf32>
      tpu.vector_store %arg16[%81, %c0_45], %80 {strides = array<i32>} : memref<8x64xf32, #tpu.memory_space<vmem>>, vector<1x64xf32>,
      %c3_i32 = arith.constant 3 : i32
      %83 = arith.addi %25, %c3_i32 : i32
      %84 = arith.index_cast %83 : i32 to index
      %85 = memref.load %arg1[%84] : memref<128xi32, #tpu.memory_space<smem>>
      %86 = arith.index_cast %85 : i32 to index
      %c0_46 = arith.constant 0 : index
      %87 = vector.load %arg4[%86, %c0_46] : memref<100x64xf32, #tpu.memory_space<vmem>>, vector<1x64xf32>
      %88 = arith.index_cast %c3_i32 : i32 to index
      %c0_47 = arith.constant 0 : index
      %89 = vector.load %arg14[%88, %c0_47] : memref<8x64xf32, #tpu.memory_space<vmem>>, vector<1x64xf32>
      tpu.vector_store %arg14[%88, %c0_47], %87 {strides = array<i32>} : memref<8x64xf32, #tpu.memory_space<vmem>>, vector<1x64xf32>,
      %90 = arith.index_cast %83 : i32 to index
      %91 = memref.load %arg2[%90] : memref<128xi32, #tpu.memory_space<smem>>
      %92 = arith.index_cast %91 : i32 to index
      %c0_48 = arith.constant 0 : index
      %93 = vector.load %arg5[%92, %c0_48] : memref<200x64xf32, #tpu.memory_space<vmem>>, vector<1x64xf32>
      %94 = arith.index_cast %c3_i32 : i32 to index
      %c0_49 = arith.constant 0 : index
      %95 = vector.load %arg15[%94, %c0_49] : memref<8x64xf32, #tpu.memory_space<vmem>>, vector<1x64xf32>
      tpu.vector_store %arg15[%94, %c0_49], %93 {strides = array<i32>} : memref<8x64xf32, #tpu.memory_space<vmem>>, vector<1x64xf32>,
      %96 = arith.index_cast %83 : i32 to index
      %97 = memref.load %arg3[%96] : memref<128xi32, #tpu.memory_space<smem>>
      %98 = arith.index_cast %97 : i32 to index
      %c0_50 = arith.constant 0 : index
      %99 = vector.load %arg6[%98, %c0_50] : memref<200x64xf32, #tpu.memory_space<vmem>>, vector<1x64xf32>
      %100 = arith.index_cast %c3_i32 : i32 to index
      %c0_51 = arith.constant 0 : index
      %101 = vector.load %arg16[%100, %c0_51] : memref<8x64xf32, #tpu.memory_space<vmem>>, vector<1x64xf32>
      tpu.vector_store %arg16[%100, %c0_51], %99 {strides = array<i32>} : memref<8x64xf32, #tpu.memory_space<vmem>>, vector<1x64xf32>,
      %c4_i32 = arith.constant 4 : i32
      %102 = arith.addi %25, %c4_i32 : i32
      %103 = arith.index_cast %102 : i32 to index
      %104 = memref.load %arg1[%103] : memref<128xi32, #tpu.memory_space<smem>>
      %105 = arith.index_cast %104 : i32 to index
      %c0_52 = arith.constant 0 : index
      %106 = vector.load %arg4[%105, %c0_52] : memref<100x64xf32, #tpu.memory_space<vmem>>, vector<1x64xf32>
      %107 = arith.index_cast %c4_i32 : i32 to index
      %c0_53 = arith.constant 0 : index
      %108 = vector.load %arg14[%107, %c0_53] : memref<8x64xf32, #tpu.memory_space<vmem>>, vector<1x64xf32>
      tpu.vector_store %arg14[%107, %c0_53], %106 {strides = array<i32>} : memref<8x64xf32, #tpu.memory_space<vmem>>, vector<1x64xf32>,
      %109 = arith.index_cast %102 : i32 to index
      %110 = memref.load %arg2[%109] : memref<128xi32, #tpu.memory_space<smem>>
      %111 = arith.index_cast %110 : i32 to index
      %c0_54 = arith.constant 0 : index
      %112 = vector.load %arg5[%111, %c0_54] : memref<200x64xf32, #tpu.memory_space<vmem>>, vector<1x64xf32>
      %113 = arith.index_cast %c4_i32 : i32 to index
      %c0_55 = arith.constant 0 : index
      %114 = vector.load %arg15[%113, %c0_55] : memref<8x64xf32, #tpu.memory_space<vmem>>, vector<1x64xf32>
      tpu.vector_store %arg15[%113, %c0_55], %112 {strides = array<i32>} : memref<8x64xf32, #tpu.memory_space<vmem>>, vector<1x64xf32>,
      %115 = arith.index_cast %102 : i32 to index
      %116 = memref.load %arg3[%115] : memref<128xi32, #tpu.memory_space<smem>>
      %117 = arith.index_cast %116 : i32 to index
      %c0_56 = arith.constant 0 : index
      %118 = vector.load %arg6[%117, %c0_56] : memref<200x64xf32, #tpu.memory_space<vmem>>, vector<1x64xf32>
      %119 = arith.index_cast %c4_i32 : i32 to index
      %c0_57 = arith.constant 0 : index
      %120 = vector.load %arg16[%119, %c0_57] : memref<8x64xf32, #tpu.memory_space<vmem>>, vector<1x64xf32>
      tpu.vector_store %arg16[%119, %c0_57], %118 {strides = array<i32>} : memref<8x64xf32, #tpu.memory_space<vmem>>, vector<1x64xf32>,
      %c5_i32 = arith.constant 5 : i32
      %121 = arith.addi %25, %c5_i32 : i32
      %122 = arith.index_cast %121 : i32 to index
      %123 = memref.load %arg1[%122] : memref<128xi32, #tpu.memory_space<smem>>
      %124 = arith.index_cast %123 : i32 to index
      %c0_58 = arith.constant 0 : index
      %125 = vector.load %arg4[%124, %c0_58] : memref<100x64xf32, #tpu.memory_space<vmem>>, vector<1x64xf32>
      %126 = arith.index_cast %c5_i32 : i32 to index
      %c0_59 = arith.constant 0 : index
      %127 = vector.load %arg14[%126, %c0_59] : memref<8x64xf32, #tpu.memory_space<vmem>>, vector<1x64xf32>
      tpu.vector_store %arg14[%126, %c0_59], %125 {strides = array<i32>} : memref<8x64xf32, #tpu.memory_space<vmem>>, vector<1x64xf32>,
      %128 = arith.index_cast %121 : i32 to index
      %129 = memref.load %arg2[%128] : memref<128xi32, #tpu.memory_space<smem>>
      %130 = arith.index_cast %129 : i32 to index
      %c0_60 = arith.constant 0 : index
      %131 = vector.load %arg5[%130, %c0_60] : memref<200x64xf32, #tpu.memory_space<vmem>>, vector<1x64xf32>
      %132 = arith.index_cast %c5_i32 : i32 to index
      %c0_61 = arith.constant 0 : index
      %133 = vector.load %arg15[%132, %c0_61] : memref<8x64xf32, #tpu.memory_space<vmem>>, vector<1x64xf32>
      tpu.vector_store %arg15[%132, %c0_61], %131 {strides = array<i32>} : memref<8x64xf32, #tpu.memory_space<vmem>>, vector<1x64xf32>,
      %134 = arith.index_cast %121 : i32 to index
      %135 = memref.load %arg3[%134] : memref<128xi32, #tpu.memory_space<smem>>
      %136 = arith.index_cast %135 : i32 to index
      %c0_62 = arith.constant 0 : index
      %137 = vector.load %arg6[%136, %c0_62] : memref<200x64xf32, #tpu.memory_space<vmem>>, vector<1x64xf32>
      %138 = arith.index_cast %c5_i32 : i32 to index
      %c0_63 = arith.constant 0 : index
      %139 = vector.load %arg16[%138, %c0_63] : memref<8x64xf32, #tpu.memory_space<vmem>>, vector<1x64xf32>
      tpu.vector_store %arg16[%138, %c0_63], %137 {strides = array<i32>} : memref<8x64xf32, #tpu.memory_space<vmem>>, vector<1x64xf32>,
      %c6_i32 = arith.constant 6 : i32
      %140 = arith.addi %25, %c6_i32 : i32
      %141 = arith.index_cast %140 : i32 to index
      %142 = memref.load %arg1[%141] : memref<128xi32, #tpu.memory_space<smem>>
      %143 = arith.index_cast %142 : i32 to index
      %c0_64 = arith.constant 0 : index
      %144 = vector.load %arg4[%143, %c0_64] : memref<100x64xf32, #tpu.memory_space<vmem>>, vector<1x64xf32>
      %145 = arith.index_cast %c6_i32 : i32 to index
      %c0_65 = arith.constant 0 : index
      %146 = vector.load %arg14[%145, %c0_65] : memref<8x64xf32, #tpu.memory_space<vmem>>, vector<1x64xf32>
      tpu.vector_store %arg14[%145, %c0_65], %144 {strides = array<i32>} : memref<8x64xf32, #tpu.memory_space<vmem>>, vector<1x64xf32>,
      %147 = arith.index_cast %140 : i32 to index
      %148 = memref.load %arg2[%147] : memref<128xi32, #tpu.memory_space<smem>>
      %149 = arith.index_cast %148 : i32 to index
      %c0_66 = arith.constant 0 : index
      %150 = vector.load %arg5[%149, %c0_66] : memref<200x64xf32, #tpu.memory_space<vmem>>, vector<1x64xf32>
      %151 = arith.index_cast %c6_i32 : i32 to index
      %c0_67 = arith.constant 0 : index
      %152 = vector.load %arg15[%151, %c0_67] : memref<8x64xf32, #tpu.memory_space<vmem>>, vector<1x64xf32>
      tpu.vector_store %arg15[%151, %c0_67], %150 {strides = array<i32>} : memref<8x64xf32, #tpu.memory_space<vmem>>, vector<1x64xf32>,
      %153 = arith.index_cast %140 : i32 to index
      %154 = memref.load %arg3[%153] : memref<128xi32, #tpu.memory_space<smem>>
      %155 = arith.index_cast %154 : i32 to index
      %c0_68 = arith.constant 0 : index
      %156 = vector.load %arg6[%155, %c0_68] : memref<200x64xf32, #tpu.memory_space<vmem>>, vector<1x64xf32>
      %157 = arith.index_cast %c6_i32 : i32 to index
      %c0_69 = arith.constant 0 : index
      %158 = vector.load %arg16[%157, %c0_69] : memref<8x64xf32, #tpu.memory_space<vmem>>, vector<1x64xf32>
      tpu.vector_store %arg16[%157, %c0_69], %156 {strides = array<i32>} : memref<8x64xf32, #tpu.memory_space<vmem>>, vector<1x64xf32>,
      %c7_i32 = arith.constant 7 : i32
      %159 = arith.addi %25, %c7_i32 : i32
      %160 = arith.index_cast %159 : i32 to index
      %161 = memref.load %arg1[%160] : memref<128xi32, #tpu.memory_space<smem>>
      %162 = arith.index_cast %161 : i32 to index
      %c0_70 = arith.constant 0 : index
      %163 = vector.load %arg4[%162, %c0_70] : memref<100x64xf32, #tpu.memory_space<vmem>>, vector<1x64xf32>
      %164 = arith.index_cast %c7_i32 : i32 to index
      %c0_71 = arith.constant 0 : index
      %165 = vector.load %arg14[%164, %c0_71] : memref<8x64xf32, #tpu.memory_space<vmem>>, vector<1x64xf32>
      tpu.vector_store %arg14[%164, %c0_71], %163 {strides = array<i32>} : memref<8x64xf32, #tpu.memory_space<vmem>>, vector<1x64xf32>,
      %166 = arith.index_cast %159 : i32 to index
      %167 = memref.load %arg2[%166] : memref<128xi32, #tpu.memory_space<smem>>
      %168 = arith.index_cast %167 : i32 to index
      %c0_72 = arith.constant 0 : index
      %169 = vector.load %arg5[%168, %c0_72] : memref<200x64xf32, #tpu.memory_space<vmem>>, vector<1x64xf32>
      %170 = arith.index_cast %c7_i32 : i32 to index
      %c0_73 = arith.constant 0 : index
      %171 = vector.load %arg15[%170, %c0_73] : memref<8x64xf32, #tpu.memory_space<vmem>>, vector<1x64xf32>
      tpu.vector_store %arg15[%170, %c0_73], %169 {strides = array<i32>} : memref<8x64xf32, #tpu.memory_space<vmem>>, vector<1x64xf32>,
      %172 = arith.index_cast %159 : i32 to index
      %173 = memref.load %arg3[%172] : memref<128xi32, #tpu.memory_space<smem>>
      %174 = arith.index_cast %173 : i32 to index
      %c0_74 = arith.constant 0 : index
      %175 = vector.load %arg6[%174, %c0_74] : memref<200x64xf32, #tpu.memory_space<vmem>>, vector<1x64xf32>
      %176 = arith.index_cast %c7_i32 : i32 to index
      %c0_75 = arith.constant 0 : index
      %177 = vector.load %arg16[%176, %c0_75] : memref<8x64xf32, #tpu.memory_space<vmem>>, vector<1x64xf32>
      tpu.vector_store %arg16[%176, %c0_75], %175 {strides = array<i32>} : memref<8x64xf32, #tpu.memory_space<vmem>>, vector<1x64xf32>,
      %c8_i32_76 = arith.constant 8 : i32
      %c0_77 = arith.constant 0 : index
      %c0_78 = arith.constant 0 : index
      %178 = vector.load %arg14[%c0_77, %c0_78] : memref<8x64xf32, #tpu.memory_space<vmem>>, vector<8x64xf32>
      %cst_79 = arith.constant dense<0.000000e+00> : vector<64xf32>
      %179 = vector.multi_reduction <add>, %178, %cst_79 [0] : vector<8x64xf32> to vector<64xf32>
      %180 = vector.shape_cast %179 : vector<64xf32> to vector<1x64xf32>
      %181 = arith.index_cast %arg20 : i32 to index
      %c0_80 = arith.constant 0 : index
      %182 = vector.load %arg17[%181, %c0_80] : memref<8x64xf32, #tpu.memory_space<vmem>>, vector<1x64xf32>
      tpu.vector_store %arg17[%181, %c0_80], %180 {strides = array<i32>} : memref<8x64xf32, #tpu.memory_space<vmem>>, vector<1x64xf32>,
      %c0_81 = arith.constant 0 : index
      %c0_82 = arith.constant 0 : index
      %183 = vector.load %arg15[%c0_81, %c0_82] : memref<8x64xf32, #tpu.memory_space<vmem>>, vector<8x64xf32>
      %cst_83 = arith.constant dense<0.000000e+00> : vector<64xf32>
      %184 = vector.multi_reduction <add>, %183, %cst_83 [0] : vector<8x64xf32> to vector<64xf32>
      %185 = vector.shape_cast %184 : vector<64xf32> to vector<1x64xf32>
      %186 = arith.index_cast %arg20 : i32 to index
      %c0_84 = arith.constant 0 : index
      %187 = vector.load %arg18[%186, %c0_84] : memref<8x64xf32, #tpu.memory_space<vmem>>, vector<1x64xf32>
      tpu.vector_store %arg18[%186, %c0_84], %185 {strides = array<i32>} : memref<8x64xf32, #tpu.memory_space<vmem>>, vector<1x64xf32>,
      %c0_85 = arith.constant 0 : index
      %c0_86 = arith.constant 0 : index
      %188 = vector.load %arg16[%c0_85, %c0_86] : memref<8x64xf32, #tpu.memory_space<vmem>>, vector<8x64xf32>
      %cst_87 = arith.constant dense<0.000000e+00> : vector<64xf32>
      %189 = vector.multi_reduction <add>, %188, %cst_87 [0] : vector<8x64xf32> to vector<64xf32>
      %190 = vector.shape_cast %189 : vector<64xf32> to vector<1x64xf32>
      %191 = arith.index_cast %arg20 : i32 to index
      %c0_88 = arith.constant 0 : index
      %192 = vector.load %arg19[%191, %c0_88] : memref<8x64xf32, #tpu.memory_space<vmem>>, vector<1x64xf32>
      tpu.vector_store %arg19[%191, %c0_88], %190 {strides = array<i32>} : memref<8x64xf32, #tpu.memory_space<vmem>>, vector<1x64xf32>,
    }
    %c8_i32_0 = arith.constant 8 : i32
    %c0 = arith.constant 0 : index
    %c0_1 = arith.constant 0 : index
    %1 = vector.load %arg17[%c0, %c0_1] : memref<8x64xf32, #tpu.memory_space<vmem>>, vector<8x64xf32>
    %c0_2 = arith.constant 0 : index
    %c0_3 = arith.constant 0 : index
    %2 = vector.load %arg7[%c0_2, %c0_3] : memref<64x128xf32, #tpu.memory_space<vmem>>, vector<64x128xf32>
    %cst = arith.constant dense<0.000000e+00> : vector<8x128xf32>
    %3 = tpu.matmul %1, %2, %cst {dimension_numbers = #tpu.dot_dimension_numbers<[1], [0], [0], [1], [0, 0, 1, 1], [], []>} : vector<8x64xf32>, vector<64x128xf32>, vector<8x128xf32> -> vector<8x128xf32>
    %c0_4 = arith.constant 0 : index
    %c0_5 = arith.constant 0 : index
    %4 = vector.load %arg18[%c0_4, %c0_5] : memref<8x64xf32, #tpu.memory_space<vmem>>, vector<8x64xf32>
    %c0_6 = arith.constant 0 : index
    %c0_7 = arith.constant 0 : index
    %5 = vector.load %arg8[%c0_6, %c0_7] : memref<64x128xf32, #tpu.memory_space<vmem>>, vector<64x128xf32>
    %cst_8 = arith.constant dense<0.000000e+00> : vector<8x128xf32>
    %6 = tpu.matmul %4, %5, %cst_8 {dimension_numbers = #tpu.dot_dimension_numbers<[1], [0], [0], [1], [0, 0, 1, 1], [], []>} : vector<8x64xf32>, vector<64x128xf32>, vector<8x128xf32> -> vector<8x128xf32>
    %7 = arith.addf %3, %6 : vector<8x128xf32>
    %c0_9 = arith.constant 0 : index
    %c0_10 = arith.constant 0 : index
    %8 = vector.load %arg19[%c0_9, %c0_10] : memref<8x64xf32, #tpu.memory_space<vmem>>, vector<8x64xf32>
    %c0_11 = arith.constant 0 : index
    %c0_12 = arith.constant 0 : index
    %9 = vector.load %arg9[%c0_11, %c0_12] : memref<64x128xf32, #tpu.memory_space<vmem>>, vector<64x128xf32>
    %cst_13 = arith.constant dense<0.000000e+00> : vector<8x128xf32>
    %10 = tpu.matmul %8, %9, %cst_13 {dimension_numbers = #tpu.dot_dimension_numbers<[1], [0], [0], [1], [0, 0, 1, 1], [], []>} : vector<8x64xf32>, vector<64x128xf32>, vector<8x128xf32> -> vector<8x128xf32>
    %11 = arith.addf %7, %10 : vector<8x128xf32>
    %c0_14 = arith.constant 0 : index
    %c0_15 = arith.constant 0 : index
    %12 = vector.load %arg10[%c0_14, %c0_15] : memref<1x128xf32, #tpu.memory_space<vmem>>, vector<1x128xf32>
    %13 = vector.broadcast %12 : vector<1x128xf32> to vector<8x128xf32>
    %14 = arith.addf %11, %13 : vector<8x128xf32>
    %cst_16 = arith.constant 0.000000e+00 : f32
    %15 = vector.broadcast %cst_16 : f32 to vector<8x128xf32>
    %16 = arith.maximumf %14, %15 : vector<8x128xf32>
    %c0_17 = arith.constant 0 : index
    %c0_18 = arith.constant 0 : index
    %17 = vector.load %arg11[%c0_17, %c0_18] : memref<128x128xf32, #tpu.memory_space<vmem>>, vector<128x128xf32>
    %cst_19 = arith.constant dense<0.000000e+00> : vector<8x128xf32>
    %18 = tpu.matmul %16, %17, %cst_19 {dimension_numbers = #tpu.dot_dimension_numbers<[1], [0], [0], [1], [0, 0, 1, 1], [], []>} : vector<8x128xf32>, vector<128x128xf32>, vector<8x128xf32> -> vector<8x128xf32>
    %c0_20 = arith.constant 0 : index
    %c0_21 = arith.constant 0 : index
    %19 = vector.load %arg12[%c0_20, %c0_21] : memref<1x128xf32, #tpu.memory_space<vmem>>, vector<1x128xf32>
    %20 = vector.broadcast %19 : vector<1x128xf32> to vector<8x128xf32>
    %21 = arith.addf %18, %20 : vector<8x128xf32>
    %c0_22 = arith.constant 0 : index
    %c0_23 = arith.constant 0 : index
    %22 = vector.load %arg13[%c0_22, %c0_23] : memref<8x128xf32, #tpu.memory_space<vmem>>, vector<8x128xf32>
    tpu.vector_store %arg13[%c0_22, %c0_23], %21 {strides = array<i32>} : memref<8x128xf32, #tpu.memory_space<vmem>>, vector<8x128xf32>,
    return
  }
  func.func @transform_0(%arg0: i32, %arg1: memref<128xi32, #tpu.memory_space<smem>>, %arg2: memref<128xi32, #tpu.memory_space<smem>>, %arg3: memref<128xi32, #tpu.memory_space<smem>>) -> (i32, i32) {
    %c0_i32 = arith.constant 0 : i32
    %c0_i32_0 = arith.constant 0 : i32
    %c0_i32_1 = arith.constant 0 : i32
    return %c0_i32, %c0_i32_0 : i32, i32
  }
  func.func @transform_1(%arg0: i32, %arg1: memref<128xi32, #tpu.memory_space<smem>>, %arg2: memref<128xi32, #tpu.memory_space<smem>>, %arg3: memref<128xi32, #tpu.memory_space<smem>>) -> (i32, i32) {
    %c0_i32 = arith.constant 0 : i32
    %c0_i32_0 = arith.constant 0 : i32
    %c0_i32_1 = arith.constant 0 : i32
    return %c0_i32, %c0_i32_0 : i32, i32
  }
  func.func @transform_2(%arg0: i32, %arg1: memref<128xi32, #tpu.memory_space<smem>>, %arg2: memref<128xi32, #tpu.memory_space<smem>>, %arg3: memref<128xi32, #tpu.memory_space<smem>>) -> (i32, i32) {
    %c0_i32 = arith.constant 0 : i32
    %c0_i32_0 = arith.constant 0 : i32
    %c0_i32_1 = arith.constant 0 : i32
    return %c0_i32, %c0_i32_0 : i32, i32
  }
  func.func @transform_3(%arg0: i32, %arg1: memref<128xi32, #tpu.memory_space<smem>>, %arg2: memref<128xi32, #tpu.memory_space<smem>>, %arg3: memref<128xi32, #tpu.memory_space<smem>>) -> (i32, i32) {
    %c0_i32 = arith.constant 0 : i32
    %c0_i32_0 = arith.constant 0 : i32
    %c0_i32_1 = arith.constant 0 : i32
    return %c0_i32, %c0_i32_0 : i32, i32
  }
  func.func @transform_4(%arg0: i32, %arg1: memref<128xi32, #tpu.memory_space<smem>>, %arg2: memref<128xi32, #tpu.memory_space<smem>>, %arg3: memref<128xi32, #tpu.memory_space<smem>>) -> (i32, i32) {
    %c0_i32 = arith.constant 0 : i32
    %c0_i32_0 = arith.constant 0 : i32
    %c0_i32_1 = arith.constant 0 : i32
    return %c0_i32, %c0_i32_0 : i32, i32
  }
  func.func @transform_5(%arg0: i32, %arg1: memref<128xi32, #tpu.memory_space<smem>>, %arg2: memref<128xi32, #tpu.memory_space<smem>>, %arg3: memref<128xi32, #tpu.memory_space<smem>>) -> (i32, i32) {
    %c0_i32 = arith.constant 0 : i32
    %c0_i32_0 = arith.constant 0 : i32
    %c0_i32_1 = arith.constant 0 : i32
    return %c0_i32, %c0_i32_0 : i32, i32
  }
  func.func @transform_6(%arg0: i32, %arg1: memref<128xi32, #tpu.memory_space<smem>>, %arg2: memref<128xi32, #tpu.memory_space<smem>>, %arg3: memref<128xi32, #tpu.memory_space<smem>>) -> (i32, i32) {
    %c0_i32 = arith.constant 0 : i32
    %c0_i32_0 = arith.constant 0 : i32
    %c0_i32_1 = arith.constant 0 : i32
    return %c0_i32, %c0_i32_0 : i32, i32
  }
  func.func @transform_7(%arg0: i32, %arg1: memref<128xi32, #tpu.memory_space<smem>>, %arg2: memref<128xi32, #tpu.memory_space<smem>>, %arg3: memref<128xi32, #tpu.memory_space<smem>>) -> (i32, i32) {
    %c0_i32 = arith.constant 0 : i32
    %c0_i32_0 = arith.constant 0 : i32
    %c0_i32_1 = arith.constant 0 : i32
    return %c0_i32, %c0_i32_0 : i32, i32
  }
  func.func @transform_8(%arg0: i32, %arg1: memref<128xi32, #tpu.memory_space<smem>>, %arg2: memref<128xi32, #tpu.memory_space<smem>>, %arg3: memref<128xi32, #tpu.memory_space<smem>>) -> (i32, i32) {
    %c0_i32 = arith.constant 0 : i32
    %c0_i32_0 = arith.constant 0 : i32
    %c0_i32_1 = arith.constant 0 : i32
    return %c0_i32, %c0_i32_0 : i32, i32
  }
  func.func @transform_9(%arg0: i32, %arg1: memref<128xi32, #tpu.memory_space<smem>>, %arg2: memref<128xi32, #tpu.memory_space<smem>>, %arg3: memref<128xi32, #tpu.memory_space<smem>>) -> (i32, i32) {
    %c0_i32 = arith.constant 0 : i32
    %c0_i32_0 = arith.constant 0 : i32
    return %arg0, %c0_i32 : i32, i32
  }
}

</mosaic_0001>

<llo_original>
// kernel: tpu_custom_call.1
$region0: #{tpu_custom_call.1}
  #allocation0 [shape = 'u32[]', space=smem, size = 0x4, offset = 0x4, fixed_abs, tag = 'smem constant byte address 0x4 - core index']
  #allocation1 [shape = 'u32[144,128]{1,0:T(1,128)}', space=vmem, size = 0x12000, scoped, tag = 'internal scratch']
  #allocation2 [shape = 'f32[8,64]{1,0:T(8,128)}', space=vmem, size = 0x1000, scoped, tag = 'scratch operand']
  #allocation3 [shape = 'f32[8,64]{1,0:T(8,128)}', space=vmem, size = 0x1000, scoped, tag = 'scratch operand']
  #allocation4 [shape = 'f32[8,64]{1,0:T(8,128)}', space=vmem, size = 0x1000, scoped, tag = 'scratch operand']
  #allocation5 [shape = 'f32[8,64]{1,0:T(8,128)}', space=vmem, size = 0x1000, scoped, tag = 'scratch operand']
  #allocation6 [shape = 'f32[8,64]{1,0:T(8,128)}', space=vmem, size = 0x1000, scoped, tag = 'scratch operand']
  #allocation7 [shape = 'f32[8,64]{1,0:T(8,128)}', space=vmem, size = 0x1000, scoped, tag = 'scratch operand']
  #allocation8 [shape = 's32[1]{0}', space=sflag, size = 0x4, scoped, tag = 'scoped memory for tpu_custom_call.1']
  #allocation9 [shape = 'u8[512]{0}', space=smem, size = 0x200, scoped, tag = 'prefetched SMEM operand 0']
  #allocation10 [shape = 'u8[512]{0}', space=smem, size = 0x200, scoped, tag = 'prefetched SMEM operand 1']
  #allocation11 [shape = 'u8[512]{0}', space=smem, size = 0x200, scoped, tag = 'prefetched SMEM operand 2']
  %s0 = inlined_call_operand.vmem [shape: s32[128], index: 0, kind: input, shape index: {}]
  %s1 = inlined_call_operand.vmem [shape: s32[128], index: 1, kind: input, shape index: {}]
  %s2 = inlined_call_operand.vmem [shape: s32[128], index: 2, kind: input, shape index: {}]
  %s3 = inlined_call_operand.vmem [shape: f32[100,64], index: 3, kind: input, shape index: {}]
  %s4 = inlined_call_operand.vmem [shape: f32[200,64], index: 4, kind: input, shape index: {}]
  %s5 = inlined_call_operand.vmem [shape: f32[200,64], index: 5, kind: input, shape index: {}]
  %s6 = inlined_call_operand.vmem [shape: f32[64,128], index: 6, kind: input, shape index: {}]
  %s7 = inlined_call_operand.vmem [shape: f32[64,128], index: 7, kind: input, shape index: {}]
  %s8 = inlined_call_operand.vmem [shape: f32[64,128], index: 8, kind: input, shape index: {}]
  %s9 = inlined_call_operand.vmem [shape: f32[1,128], index: 9, kind: input, shape index: {}]
  %s10 = inlined_call_operand.vmem [shape: f32[128,128], index: 10, kind: input, shape index: {}]
  %s11 = inlined_call_operand.vmem [shape: f32[1,128], index: 11, kind: input, shape index: {}]
  %s12 = inlined_call_operand.hbm [shape: f32[16,128], index: 12, kind: output, shape index: {}]
  %s13 = sld [smem:[#allocation0]]
  $region76: #{tpu_custom_call.1} parent=0
    _
  %s15 = ssub.s32 1, %s13
  %s16 = scalar_select 0, %s15, %s13
  %s17 = sshll.u32 %s0, 4
  %s18 = int_to_ptr.vmem [resolvable:$true] %s17
  %20 = dma.vmem_to_smem %s18, 16, [#allocation9], [#allocation8]
  %s21 = sshll.u32 %s1, 4
  %s22 = int_to_ptr.vmem [resolvable:$true] %s21
  %24 = dma.vmem_to_smem %s22, 16, [#allocation10], [#allocation8]
  %s25 = sshll.u32 %s2, 4
  %s26 = int_to_ptr.vmem [resolvable:$true] %s25
  %28 = dma.vmem_to_smem %s26, 16, [#allocation11], [#allocation8]
  %29 = dma.done [#allocation8], 48
  %30 = sfence
  $region1: #{tpu_custom_call.1} parent=0
    #allocation12 [shape = 'u8[8192]{0}', space=vmem, size = 0x2000, scoped, tag = 'output window, operand 0']
    #allocation13 [shape = 's32[2]{0}', space=sflag, size = 0x8, scoped, tag = 'scoped memory for tpu_custom_call.1']
    %31 = vsyncpa [#allocation13], 0
    %s32 = scalar_lea.sflag [#allocation13], 1
    %33 = vsyncpa %s32, 0
    loop: start=0, step=1, limit=4
    $region2: #{tpu_custom_call.1} parent=1 // loop_pre_header
      _
    $region3: #{tpu_custom_call.1} parent=1 // loop_header
      %s35 = sphi 0, %s39
      %p36 = scmp.ge.s32.totalorder %s35, 4
      %s43 = sphi 0, %s43
      %s45 = sphi 0, %s43
      %s46 = sphi 0, %s45
      %s60 = sphi 0, %s46
      %s64 = sphi 0, %s64
      %s66 = sphi 0, %s64
      %s67 = sphi 0, %s66
      %s81 = sphi 0, %s67
      %s85 = sphi 0, %s85
      %s87 = sphi 0, %s85
      %s88 = sphi 0, %s87
      %s102 = sphi 0, %s88
      %s106 = sphi 0, %s106
      %s108 = sphi 0, %s106
      %s109 = sphi 0, %s108
      %s123 = sphi 0, %s109
      %s127 = sphi 0, %s127
      %s129 = sphi 0, %s127
      %s130 = sphi 0, %s129
      %s144 = sphi 0, %s130
      %s148 = sphi 0, %s148
      %s150 = sphi 0, %s148
      %s151 = sphi 0, %s150
      %s165 = sphi 0, %s151
      %s169 = sphi 0, %s169
      %s171 = sphi 0, %s169
      %s172 = sphi 0, %s171
      %s186 = sphi 0, %s172
      %s190 = sphi 0, %s190
      %s192 = sphi 0, %s190
      %s193 = sphi 0, %s192
      %s207 = sphi 0, %s193
      %s211 = sphi 0, %s211
      %s213 = sphi 0, %s211
      %s214 = sphi 0, %s213
      %s228 = sphi 0, %s214
      %s234 = sphi 0, %s236
      %s237 = sphi 0, %s234
      %s238 = sphi 0, %s237
      %s254 = sphi 0, %s238
    $region4: #{tpu_custom_call.1} parent=1 // loop_header_branch
      %38 = sbr.rel (%p36) target = $region8
    $region5: #{tpu_custom_call.1} parent=1 // loop_body
      %s40 = ssub.s32 %s35, 1
      %s41 = ssub.s32 %s35, 2
      %s42 = sadd.s32 %s35, 1
      %s44 = sadd.s32 %s43, 1
      %p47 = scmp.eq.s32.totalorder %s35, 1
      %p48 = scmp.ne.s32.totalorder %s43, %s45
      %p49 = scmp.eq.s32.totalorder %s35, 0
      %p50 = por %p48, %p49
      %p51 = scmp.ne.s32.totalorder %s43, %s45
      %p52 = scmp.eq.s32.totalorder %s40, 1
      %p53 = por %p51, %p52
      %p54 = scmp.ne.s32.totalorder %s45, %s46
      %p55 = scmp.eq.s32.totalorder %s40, 0
      %p56 = por %p54, %p55
      %p57 = scmp.ne.s32.totalorder %s45, %s46
      %p58 = scmp.eq.s32.totalorder %s41, 1
      %p59 = por %p57, %p58
      %p61 = scmp.ne.s32.totalorder %s46, %s60
      %p62 = scmp.eq.s32.totalorder %s41, 0
      %p63 = por %p61, %p62
      %s65 = sadd.s32 %s64, 1
      %p68 = scmp.eq.s32.totalorder %s35, 1
      %p69 = scmp.ne.s32.totalorder %s64, %s66
      %p70 = scmp.eq.s32.totalorder %s35, 0
      %p71 = por %p69, %p70
      %p72 = scmp.ne.s32.totalorder %s64, %s66
      %p73 = scmp.eq.s32.totalorder %s40, 1
      %p74 = por %p72, %p73
      %p75 = scmp.ne.s32.totalorder %s66, %s67
      %p76 = scmp.eq.s32.totalorder %s40, 0
      %p77 = por %p75, %p76
      %p78 = scmp.ne.s32.totalorder %s66, %s67
      %p79 = scmp.eq.s32.totalorder %s41, 1
      %p80 = por %p78, %p79
      %p82 = scmp.ne.s32.totalorder %s67, %s81
      %p83 = scmp.eq.s32.totalorder %s41, 0
      %p84 = por %p82, %p83
      %s86 = sadd.s32 %s85, 1
      %p89 = scmp.eq.s32.totalorder %s35, 1
      %p90 = scmp.ne.s32.totalorder %s85, %s87
      %p91 = scmp.eq.s32.totalorder %s35, 0
      %p92 = por %p90, %p91
      %p93 = scmp.ne.s32.totalorder %s85, %s87
      %p94 = scmp.eq.s32.totalorder %s40, 1
      %p95 = por %p93, %p94
      %p96 = scmp.ne.s32.totalorder %s87, %s88
      %p97 = scmp.eq.s32.totalorder %s40, 0
      %p98 = por %p96, %p97
      %p99 = scmp.ne.s32.totalorder %s87, %s88
      %p100 = scmp.eq.s32.totalorder %s41, 1
      %p101 = por %p99, %p100
      %p103 = scmp.ne.s32.totalorder %s88, %s102
      %p104 = scmp.eq.s32.totalorder %s41, 0
      %p105 = por %p103, %p104
      %s107 = sadd.s32 %s106, 1
      %p110 = scmp.eq.s32.totalorder %s35, 1
      %p111 = scmp.ne.s32.totalorder %s106, %s108
      %p112 = scmp.eq.s32.totalorder %s35, 0
      %p113 = por %p111, %p112
      %p114 = scmp.ne.s32.totalorder %s106, %s108
      %p115 = scmp.eq.s32.totalorder %s40, 1
      %p116 = por %p114, %p115
      %p117 = scmp.ne.s32.totalorder %s108, %s109
      %p118 = scmp.eq.s32.totalorder %s40, 0
      %p119 = por %p117, %p118
      %p120 = scmp.ne.s32.totalorder %s108, %s109
      %p121 = scmp.eq.s32.totalorder %s41, 1
      %p122 = por %p120, %p121
      %p124 = scmp.ne.s32.totalorder %s109, %s123
      %p125 = scmp.eq.s32.totalorder %s41, 0
      %p126 = por %p124, %p125
      %s128 = sadd.s32 %s127, 1
      %p131 = scmp.eq.s32.totalorder %s35, 1
      %p132 = scmp.ne.s32.totalorder %s127, %s129
      %p133 = scmp.eq.s32.totalorder %s35, 0
      %p134 = por %p132, %p133
      %p135 = scmp.ne.s32.totalorder %s127, %s129
      %p136 = scmp.eq.s32.totalorder %s40, 1
      %p137 = por %p135, %p136
      %p138 = scmp.ne.s32.totalorder %s129, %s130
      %p139 = scmp.eq.s32.totalorder %s40, 0
      %p140 = por %p138, %p139
      %p141 = scmp.ne.s32.totalorder %s129, %s130
      %p142 = scmp.eq.s32.totalorder %s41, 1
      %p143 = por %p141, %p142
      %p145 = scmp.ne.s32.totalorder %s130, %s144
      %p146 = scmp.eq.s32.totalorder %s41, 0
      %p147 = por %p145, %p146
      %s149 = sadd.s32 %s148, 1
      %p152 = scmp.eq.s32.totalorder %s35, 1
      %p153 = scmp.ne.s32.totalorder %s148, %s150
      %p154 = scmp.eq.s32.totalorder %s35, 0
      %p155 = por %p153, %p154
      %p156 = scmp.ne.s32.totalorder %s148, %s150
      %p157 = scmp.eq.s32.totalorder %s40, 1
      %p158 = por %p156, %p157
      %p159 = scmp.ne.s32.totalorder %s150, %s151
      %p160 = scmp.eq.s32.totalorder %s40, 0
      %p161 = por %p159, %p160
      %p162 = scmp.ne.s32.totalorder %s150, %s151
      %p163 = scmp.eq.s32.totalorder %s41, 1
      %p164 = por %p162, %p163
      %p166 = scmp.ne.s32.totalorder %s151, %s165
      %p167 = scmp.eq.s32.totalorder %s41, 0
      %p168 = por %p166, %p167
      %s170 = sadd.s32 %s169, 1
      %p173 = scmp.eq.s32.totalorder %s35, 1
      %p174 = scmp.ne.s32.totalorder %s169, %s171
      %p175 = scmp.eq.s32.totalorder %s35, 0
      %p176 = por %p174, %p175
      %p177 = scmp.ne.s32.totalorder %s169, %s171
      %p178 = scmp.eq.s32.totalorder %s40, 1
      %p179 = por %p177, %p178
      %p180 = scmp.ne.s32.totalorder %s171, %s172
      %p181 = scmp.eq.s32.totalorder %s40, 0
      %p182 = por %p180, %p181
      %p183 = scmp.ne.s32.totalorder %s171, %s172
      %p184 = scmp.eq.s32.totalorder %s41, 1
      %p185 = por %p183, %p184
      %p187 = scmp.ne.s32.totalorder %s172, %s186
      %p188 = scmp.eq.s32.totalorder %s41, 0
      %p189 = por %p187, %p188
      %s191 = sadd.s32 %s190, 1
      %p194 = scmp.eq.s32.totalorder %s35, 1
      %p195 = scmp.ne.s32.totalorder %s190, %s192
      %p196 = scmp.eq.s32.totalorder %s35, 0
      %p197 = por %p195, %p196
      %p198 = scmp.ne.s32.totalorder %s190, %s192
      %p199 = scmp.eq.s32.totalorder %s40, 1
      %p200 = por %p198, %p199
      %p201 = scmp.ne.s32.totalorder %s192, %s193
      %p202 = scmp.eq.s32.totalorder %s40, 0
      %p203 = por %p201, %p202
      %p204 = scmp.ne.s32.totalorder %s192, %s193
      %p205 = scmp.eq.s32.totalorder %s41, 1
      %p206 = por %p204, %p205
      %p208 = scmp.ne.s32.totalorder %s193, %s207
      %p209 = scmp.eq.s32.totalorder %s41, 0
      %p210 = por %p208, %p209
      %s212 = sadd.s32 %s211, 1
      %p215 = scmp.eq.s32.totalorder %s35, 1
      %p216 = scmp.ne.s32.totalorder %s211, %s213
      %p217 = scmp.eq.s32.totalorder %s35, 0
      %p218 = por %p216, %p217
      %p219 = scmp.ne.s32.totalorder %s211, %s213
      %p220 = scmp.eq.s32.totalorder %s40, 1
      %p221 = por %p219, %p220
      %p222 = scmp.ne.s32.totalorder %s213, %s214
      %p223 = scmp.eq.s32.totalorder %s40, 0
      %p224 = por %p222, %p223
      %p225 = scmp.ne.s32.totalorder %s213, %s214
      %p226 = scmp.eq.s32.totalorder %s41, 1
      %p227 = por %p225, %p226
      %p229 = scmp.ne.s32.totalorder %s214, %s228
      %p230 = scmp.eq.s32.totalorder %s41, 0
      %p231 = por %p229, %p230
      %s232 = ssub.s32 %s35, %s42
      %p233 = scmp.eq.s32.totalorder %s232, 0
      %s235 = sadd.s32 %s234, 1
      %s236 = scalar_select %p233, %s234, %s235
      %p239 = pneg %p233
      %p240 = scmp.eq.s32.totalorder %s35, 1
      %p241 = por %p239, %p240
      %p242 = scmp.ne.s32.totalorder %s234, %s237
      %p243 = scmp.eq.s32.totalorder %s35, 0
      %p244 = por %p242, %p243
      %p245 = scmp.ne.s32.totalorder %s234, %s237
      %p246 = scmp.eq.s32.totalorder %s40, 1
      %p247 = por %p245, %p246
      %p248 = scmp.ne.s32.totalorder %s237, %s238
      %p249 = scmp.eq.s32.totalorder %s40, 0
      %p250 = por %p248, %p249
      %p251 = scmp.ne.s32.totalorder %s237, %s238
      %p252 = scmp.eq.s32.totalorder %s41, 1
      %p253 = por %p251, %p252
      %p255 = scmp.ne.s32.totalorder %s238, %s254
      %p256 = scmp.eq.s32.totalorder %s41, 0
      %p257 = por %p255, %p256
      %p258 = scmp.le.s32.totalorder 1, %s35
      %p259 = scmp.lt.s32.totalorder %s35, 3
      %p260 = pnand %p258, %p259
      %p261 = pneg %p260
      // Predicated region
      $region9: #{tpu_custom_call.1} parent=5 // pred_check
        _
      $region10: #{tpu_custom_call.1} parent=5 // pred_check_branch
        %263 = sbr.rel (%p260) target = $region12
      $region11: #{tpu_custom_call.1} parent=5 // pred_region
        %s264 = ssub.s32 %s35, 1
        // Predicated region
        $region13: #{tpu_custom_call.1} parent=11 // pred_check
          %p265 = pneg %p56
        $region14: #{tpu_custom_call.1} parent=11 // pred_check_branch
          %267 = sbr.rel (%p265) target = $region16
        $region15: #{tpu_custom_call.1} parent=11 // pred_region
          _
        $region16: #{tpu_custom_call.1} parent=11 // pred_fallthru
          _
        // Predicated region
        $region17: #{tpu_custom_call.1} parent=11 // pred_check
          %p268 = pneg %p77
        $region18: #{tpu_custom_call.1} parent=11 // pred_check_branch
          %270 = sbr.rel (%p268) target = $region20
        $region19: #{tpu_custom_call.1} parent=11 // pred_region
          _
        $region20: #{tpu_custom_call.1} parent=11 // pred_fallthru
          _
        // Predicated region
        $region21: #{tpu_custom_call.1} parent=11 // pred_check
          %p271 = pneg %p98
        $region22: #{tpu_custom_call.1} parent=11 // pred_check_branch
          %273 = sbr.rel (%p271) target = $region24
        $region23: #{tpu_custom_call.1} parent=11 // pred_region
          _
        $region24: #{tpu_custom_call.1} parent=11 // pred_fallthru
          _
        // Predicated region
        $region25: #{tpu_custom_call.1} parent=11 // pred_check
          %p274 = pneg %p119
        $region26: #{tpu_custom_call.1} parent=11 // pred_check_branch
          %276 = sbr.rel (%p274) target = $region28
        $region27: #{tpu_custom_call.1} parent=11 // pred_region
          _
        $region28: #{tpu_custom_call.1} parent=11 // pred_fallthru
          _
        // Predicated region
        $region29: #{tpu_custom_call.1} parent=11 // pred_check
          %p277 = pneg %p140
        $region30: #{tpu_custom_call.1} parent=11 // pred_check_branch
          %279 = sbr.rel (%p277) target = $region32
        $region31: #{tpu_custom_call.1} parent=11 // pred_region
          _
        $region32: #{tpu_custom_call.1} parent=11 // pred_fallthru
          _
        // Predicated region
        $region33: #{tpu_custom_call.1} parent=11 // pred_check
          %p280 = pneg %p161
        $region34: #{tpu_custom_call.1} parent=11 // pred_check_branch
          %282 = sbr.rel (%p280) target = $region36
        $region35: #{tpu_custom_call.1} parent=11 // pred_region
          _
        $region36: #{tpu_custom_call.1} parent=11 // pred_fallthru
          _
        // Predicated region
        $region37: #{tpu_custom_call.1} parent=11 // pred_check
          %p283 = pneg %p182
        $region38: #{tpu_custom_call.1} parent=11 // pred_check_branch
          %285 = sbr.rel (%p283) target = $region40
        $region39: #{tpu_custom_call.1} parent=11 // pred_region
          _
        $region40: #{tpu_custom_call.1} parent=11 // pred_fallthru
          _
        // Predicated region
        $region41: #{tpu_custom_call.1} parent=11 // pred_check
          %p286 = pneg %p203
        $region42: #{tpu_custom_call.1} parent=11 // pred_check_branch
          %288 = sbr.rel (%p286) target = $region44
        $region43: #{tpu_custom_call.1} parent=11 // pred_region
          _
        $region44: #{tpu_custom_call.1} parent=11 // pred_fallthru
          _
        // Predicated region
        $region45: #{tpu_custom_call.1} parent=11 // pred_check
          %p289 = pneg %p224
        $region46: #{tpu_custom_call.1} parent=11 // pred_check_branch
          %291 = sbr.rel (%p289) target = $region48
        $region47: #{tpu_custom_call.1} parent=11 // pred_region
          _
        $region48: #{tpu_custom_call.1} parent=11 // pred_fallthru
          _
      $region12: #{tpu_custom_call.1} parent=5 // pred_fallthru
        _
      %p292 = scmp.lt.s32.totalorder %s35, 2
      // Predicated region
      $region49: #{tpu_custom_call.1} parent=5 // pred_check
        %p293 = pneg %p292
      $region50: #{tpu_custom_call.1} parent=5 // pred_check_branch
        %295 = sbr.rel (%p293) target = $region52
      $region51: #{tpu_custom_call.1} parent=5 // pred_region
        _
      $region52: #{tpu_custom_call.1} parent=5 // pred_fallthru
        _
      %p296 = scmp.le.s32.totalorder 1, %s35
      %p297 = scmp.lt.s32.totalorder %s35, 3
      %p298 = pnand %p296, %p297
      %p299 = pneg %p298
      // Predicated region
      $region53: #{tpu_custom_call.1} parent=5 // pred_check
        _
      $region54: #{tpu_custom_call.1} parent=5 // pred_check_branch
        %301 = sbr.rel (%p298) target = $region56
      $region55: #{tpu_custom_call.1} parent=5 // pred_region
        %s302 = ssub.s32 %s35, 1
        %p303 = pneg %p56
        %p304 = pneg %p53
        %p305 = pneg %p77
        %p306 = pneg %p74
        %p307 = pneg %p98
        %p308 = pneg %p95
        %p309 = pneg %p119
        %p310 = pneg %p116
        %p311 = pneg %p140
        %p312 = pneg %p137
        %p313 = pneg %p161
        %p314 = pneg %p158
        %p315 = pneg %p182
        %p316 = pneg %p179
        %p317 = pneg %p203
        %p318 = pneg %p200
        %p319 = pneg %p224
        %p320 = pneg %p221
        %p321 = pneg %p250
        %p322 = pneg %p247
        %s323 = sand.u32 %s237, 1
        %s324 = scalar_lea.sflag [#allocation13], %s323
        %s325 = sand.u32 %s237, 1
        %s326 = smul.addr %s325, 8
        %s327 = scalar_lea.vmem [#allocation12], %s326
        loop: start=0, step=1, limit=8
        $region57: #{tpu_custom_call.1} parent=55 // loop_pre_header
          _
        $region58: #{tpu_custom_call.1} parent=55 // loop_header
          %s329 = sphi 0, %s333
          %p330 = scmp.ge.s32.totalorder %s329, 8
        $region59: #{tpu_custom_call.1} parent=55 // loop_header_branch
          %332 = sbr.rel (%p330) target = $region63
        $region60: #{tpu_custom_call.1} parent=55 // loop_body
          %s334 = smul.u32 %s40, 8
          %s335 = sadd.s32 %s334, %s329
          %s336 = smul.u32 %s335, 8
          %s337 = sld [smem:[#allocation9 + %s336]]
          %s338 = scalar_lea.vmem %s3, %s337
          %v339 = vld [vmem:[%s338] sm:$0x1]
          %vm340 = vcmask 516096
          %341 = vst.msk [vmem:[#allocation2] sm:$0x1] %vm340, %v339
          %s342 = sld [smem:[#allocation10 + %s336]]
          %s343 = scalar_lea.vmem %s4, %s342
          %v344 = vld [vmem:[%s343] sm:$0x1]
          %345 = vst.msk [vmem:[#allocation3] sm:$0x1] %vm340, %v344
          %s346 = sld [smem:[#allocation11 + %s336]]
          %s347 = scalar_lea.vmem %s5, %s346
          %v348 = vld [vmem:[%s347] sm:$0x1]
          %349 = vst.msk [vmem:[#allocation4] sm:$0x1] %vm340, %v348
          %s350 = sadd.s32 %s336, 1
          %s351 = sld [smem:[#allocation9 + %s350]]
          %s352 = scalar_lea.vmem %s3, %s351
          %v353 = vld [vmem:[%s352] sm:$0x1]
          %354 = vst.msk [vmem:[#allocation2 + $0x1] sm:$0x1] %vm340, %v353
          %s355 = sld [smem:[#allocation10 + %s350]]
          %s356 = scalar_lea.vmem %s4, %s355
          %v357 = vld [vmem:[%s356] sm:$0x1]
          %358 = vst.msk [vmem:[#allocation3 + $0x1] sm:$0x1] %vm340, %v357
          %s359 = sld [smem:[#allocation11 + %s350]]
          %s360 = scalar_lea.vmem %s5, %s359
          %v361 = vld [vmem:[%s360] sm:$0x1]
          %362 = vst.msk [vmem:[#allocation4 + $0x1] sm:$0x1] %vm340, %v361
          %s363 = sadd.s32 %s336, 2
          %s364 = sld [smem:[#allocation9 + %s363]]
          %s365 = scalar_lea.vmem %s3, %s364
          %v366 = vld [vmem:[%s365] sm:$0x1]
          %367 = vst.msk [vmem:[#allocation2 + $0x2] sm:$0x1] %vm340, %v366
          %s368 = sld [smem:[#allocation10 + %s363]]
          %s369 = scalar_lea.vmem %s4, %s368
          %v370 = vld [vmem:[%s369] sm:$0x1]
          %371 = vst.msk [vmem:[#allocation3 + $0x2] sm:$0x1] %vm340, %v370
          %s372 = sld [smem:[#allocation11 + %s363]]
          %s373 = scalar_lea.vmem %s5, %s372
          %v374 = vld [vmem:[%s373] sm:$0x1]
          %375 = vst.msk [vmem:[#allocation4 + $0x2] sm:$0x1] %vm340, %v374
          %s376 = sadd.s32 %s336, 3
          %s377 = sld [smem:[#allocation9 + %s376]]
          %s378 = scalar_lea.vmem %s3, %s377
          %v379 = vld [vmem:[%s378] sm:$0x1]
          %380 = vst.msk [vmem:[#allocation2 + $0x3] sm:$0x1] %vm340, %v379
          %s381 = sld [smem:[#allocation10 + %s376]]
          %s382 = scalar_lea.vmem %s4, %s381
          %v383 = vld [vmem:[%s382] sm:$0x1]
          %384 = vst.msk [vmem:[#allocation3 + $0x3] sm:$0x1] %vm340, %v383
          %s385 = sld [smem:[#allocation11 + %s376]]
          %s386 = scalar_lea.vmem %s5, %s385
          %v387 = vld [vmem:[%s386] sm:$0x1]
          %388 = vst.msk [vmem:[#allocation4 + $0x3] sm:$0x1] %vm340, %v387
          %s389 = sadd.s32 %s336, 4
          %s390 = sld [smem:[#allocation9 + %s389]]
          %s391 = scalar_lea.vmem %s3, %s390
          %v392 = vld [vmem:[%s391] sm:$0x1]
          %393 = vst.msk [vmem:[#allocation2 + $0x4] sm:$0x1] %vm340, %v392
          %s394 = sld [smem:[#allocation10 + %s389]]
          %s395 = scalar_lea.vmem %s4, %s394
          %v396 = vld [vmem:[%s395] sm:$0x1]
          %397 = vst.msk [vmem:[#allocation3 + $0x4] sm:$0x1] %vm340, %v396
          %s398 = sld [smem:[#allocation11 + %s389]]
          %s399 = scalar_lea.vmem %s5, %s398
          %v400 = vld [vmem:[%s399] sm:$0x1]
          %401 = vst.msk [vmem:[#allocation4 + $0x4] sm:$0x1] %vm340, %v400
          %s402 = sadd.s32 %s336, 5
          %s403 = sld [smem:[#allocation9 + %s402]]
          %s404 = scalar_lea.vmem %s3, %s403
          %v405 = vld [vmem:[%s404] sm:$0x1]
          %406 = vst.msk [vmem:[#allocation2 + $0x5] sm:$0x1] %vm340, %v405
          %s407 = sld [smem:[#allocation10 + %s402]]
          %s408 = scalar_lea.vmem %s4, %s407
          %v409 = vld [vmem:[%s408] sm:$0x1]
          %410 = vst.msk [vmem:[#allocation3 + $0x5] sm:$0x1] %vm340, %v409
          %s411 = sld [smem:[#allocation11 + %s402]]
          %s412 = scalar_lea.vmem %s5, %s411
          %v413 = vld [vmem:[%s412] sm:$0x1]
          %414 = vst.msk [vmem:[#allocation4 + $0x5] sm:$0x1] %vm340, %v413
          %s415 = sadd.s32 %s336, 6
          %s416 = sld [smem:[#allocation9 + %s415]]
          %s417 = scalar_lea.vmem %s3, %s416
          %v418 = vld [vmem:[%s417] sm:$0x1]
          %419 = vst.msk [vmem:[#allocation2 + $0x6] sm:$0x1] %vm340, %v418
          %s420 = sld [smem:[#allocation10 + %s415]]
          %s421 = scalar_lea.vmem %s4, %s420
          %v422 = vld [vmem:[%s421] sm:$0x1]
          %423 = vst.msk [vmem:[#allocation3 + $0x6] sm:$0x1] %vm340, %v422
          %s424 = sld [smem:[#allocation11 + %s415]]
          %s425 = scalar_lea.vmem %s5, %s424
          %v426 = vld [vmem:[%s425] sm:$0x1]
          %427 = vst.msk [vmem:[#allocation4 + $0x6] sm:$0x1] %vm340, %v426
          %s428 = sadd.s32 %s336, 7
          %s429 = sld [smem:[#allocation9 + %s428]]
          %s430 = scalar_lea.vmem %s3, %s429
          %v431 = vld [vmem:[%s430] sm:$0x1]
          %432 = vst.msk [vmem:[#allocation2 + $0x7] sm:$0x1] %vm340, %v431
          %s433 = sld [smem:[#allocation10 + %s428]]
          %s434 = scalar_lea.vmem %s4, %s433
          %v435 = vld [vmem:[%s434] sm:$0x1]
          %436 = vst.msk [vmem:[#allocation3 + $0x7] sm:$0x1] %vm340, %v435
          %s437 = sld [smem:[#allocation11 + %s428]]
          %s438 = scalar_lea.vmem %s5, %s437
          %v439 = vld [vmem:[%s438] sm:$0x1]
          %440 = vst.msk [vmem:[#allocation4 + $0x7] sm:$0x1] %vm340, %v439
          %v441 = vld [vmem:[#allocation2] sm:$0xff]
          %vm442 = vcmask 523264
          %v443 = vsel %vm442, %v441, 0.0
          %v444 = vrot.slane %v443, 4
          %v445 = vadd.f32 %v443, %v444
          %v446 = vrot.slane %v445, 2
          %v447 = vadd.f32 %v445, %v446
          %v448 = vrot.slane %v447, 1
          %v449 = vadd.f32 %v447, %v448
          %s450 = scalar_lea.vmem [#allocation5], %s329
          %451 = vst.msk [vmem:[%s450] sm:$0x1] %vm340, %v449
          %v452 = vld [vmem:[#allocation3] sm:$0xff]
          %v453 = vsel %vm442, %v452, 0.0
          %v454 = vrot.slane %v453, 4
          %v455 = vadd.f32 %v453, %v454
          %v456 = vrot.slane %v455, 2
          %v457 = vadd.f32 %v455, %v456
          %v458 = vrot.slane %v457, 1
          %v459 = vadd.f32 %v457, %v458
          %s460 = scalar_lea.vmem [#allocation6], %s329
          %461 = vst.msk [vmem:[%s460] sm:$0x1] %vm340, %v459
          %v462 = vld [vmem:[#allocation4] sm:$0xff]
          %v463 = vsel %vm442, %v462, 0.0
          %v464 = vrot.slane %v463, 4
          %v465 = vadd.f32 %v463, %v464
          %v466 = vrot.slane %v465, 2
          %v467 = vadd.f32 %v465, %v466
          %v468 = vrot.slane %v467, 1
          %v469 = vadd.f32 %v467, %v468
          %s470 = scalar_lea.vmem [#allocation7], %s329
          %471 = vst.msk [vmem:[%s470] sm:$0x1] %vm340, %v469
        $region61: #{tpu_custom_call.1} parent=55 // loop_footer
          %s333 = sadd.s32 1, %s329
        $region62: #{tpu_custom_call.1} parent=55 // loop_footer_branch
          %328 = sbr.rel target = $region58
        $region63: #{tpu_custom_call.1} parent=55 // loop_exit
          _
        %v472 = vld [vmem:[#allocation5] sm:$0xff]
        %v473 = vld [vmem:[%s6] sm:$0xff]
        %v474 = vld [vmem:[%s6 + $0x8] sm:$0xff]
        %v475 = vld [vmem:[%s6 + $0x10] sm:$0xff]
        %v476 = vld [vmem:[%s6 + $0x18] sm:$0xff]
        %v477 = vld [vmem:[%s6 + $0x20] sm:$0xff]
        %v478 = vld [vmem:[%s6 + $0x28] sm:$0xff]
        %v479 = vld [vmem:[%s6 + $0x30] sm:$0xff]
        %v480 = vld [vmem:[%s6 + $0x38] sm:$0xff]
        %v481 = vld [vmem:[#allocation6] sm:$0xff]
        %v482 = vld [vmem:[%s7] sm:$0xff]
        %v483 = vld [vmem:[%s7 + $0x8] sm:$0xff]
        %v484 = vld [vmem:[%s7 + $0x10] sm:$0xff]
        %v485 = vld [vmem:[%s7 + $0x18] sm:$0xff]
        %v486 = vld [vmem:[%s7 + $0x20] sm:$0xff]
        %v487 = vld [vmem:[%s7 + $0x28] sm:$0xff]
        %v488 = vld [vmem:[%s7 + $0x30] sm:$0xff]
        %v489 = vld [vmem:[%s7 + $0x38] sm:$0xff]
        %vm490 = vcmask 523264
        %v492 = vsel %vm490, %v481, 0
        %494 = vmatprep.subr.mxu0 0.0
        %495 = vmatpush1.msra.mxu0 %v482
        %496 = vmatprep.subr.mxu0 0.0
        %497 = vmatpush1.msra.mxu0 %v483
        %498 = vmatprep.subr.mxu0 0.0
        %499 = vmatpush1.msra.mxu0 %v484
        %500 = vmatprep.subr.mxu0 0.0
        %501 = vmatpush1.msra.mxu0 %v485
        %502 = vmatprep.subr.mxu0 0.0
        %503 = vmatpush1.msra.mxu0 %v486
        %504 = vmatprep.subr.mxu0 0.0
        %505 = vmatpush1.msra.mxu0 %v487
        %506 = vmatprep.subr.mxu0 0.0
        %507 = vmatpush1.msra.mxu0 %v488
        %508 = vmatprep.subr.mxu0 0.0
        %509 = vmatpush1.msra.mxu0 %v489
        %510 = vmatprep.subr.mxu0 0.0
        %511 = vmatpush1.msra.mxu0 0.0
        %512 = vmatprep.subr.mxu0 0.0
        %513 = vmatpush1.msra.mxu0 0.0
        %514 = vmatprep.subr.mxu0 0.0
        %515 = vmatpush1.msra.mxu0 0.0
        %516 = vmatprep.subr.mxu0 0.0
        %517 = vmatpush1.msra.mxu0 0.0
        %518 = vmatprep.subr.mxu0 0.0
        %519 = vmatpush1.msra.mxu0 0.0
        %520 = vmatprep.subr.mxu0 0.0
        %521 = vmatpush1.msra.mxu0 0.0
        %522 = vmatprep.subr.mxu0 0.0
        %523 = vmatpush1.msra.mxu0 0.0
        %524 = vmatprep.subr.mxu0 0.0
        %525 = vmatpush1.msra.mxu0 0.0
        %526 = vmatprep.subr.mxu0 0.0
        %527 = vmatpush1.msra.mxu0 0.0
        %528 = vmatprep.subr.mxu0 0.0
        %529 = vmatpush1.msra.mxu0 0.0
        %530 = vmatprep.subr.mxu0 0.0
        %531 = vmatpush1.msra.mxu0 0.0
        %532 = vmatprep.subr.mxu0 0.0
        %533 = vmatpush1.msra.mxu0 0.0
        %534 = vmatprep.subr.mxu0 0.0
        %535 = vmatpush1.msra.mxu0 0.0
        %536 = vmatprep.subr.mxu0 0.0
        %537 = vmatpush1.msra.mxu0 0.0
        %538 = vmatprep.subr.mxu0 0.0
        %539 = vmatpush1.msra.mxu0 0.0
        %540 = vmatprep.subr.mxu0 0.0
        %541 = vmatpush1.msra.mxu0 0.0
        %542 = vmatprep.subr.mxu0 0.0
        %543 = vmatpush1.msra.mxu0 0.0
        %544 = vmatprep.subr.mxu0 0.0
        %545 = vmatpush1.msra.mxu0 0.0
        %546 = vmatprep.subr.mxu0 0.0
        %547 = vmatpush1.msra.mxu0 0.0
        %548 = vmatprep.subr.mxu0 0.0
        %549 = vmatpush1.msra.mxu0 0.0
        %550 = vmatprep.subr.mxu0 0.0
        %551 = vmatpush1.msra.mxu0 0.0
        %552 = vmatprep.subr.mxu0 0.0
        %553 = vmatpush1.msra.mxu0 0.0
        %554 = vmatprep.subr.mxu0 0.0
        %555 = vmatpush1.msra.mxu0 0.0
        %556 = vmatprep.subr.mxu0 0.0
        %557 = vmatpush1.msra.mxu0 0.0
        %558 = vmatprep.mubr.f32.mxu0 0.0
        %559 = vmatmul.mubr.f32.gmra.mrb[0].mxu0 %v492
        %v560 = vpop.f32.mrb[0].mxu0
        %v561 = vadd.f32 0.0, %v560
        %v562 = vpop.f32.mrb[0].mxu0
        %563 = vdwg.mxu0
        %v565 = vsel %vm490, %v472, 0
        %567 = vmatprep.subr.mxu0 0.0
        %568 = vmatpush1.msra.mxu0 %v473
        %569 = vmatprep.subr.mxu0 0.0
        %570 = vmatpush1.msra.mxu0 %v474
        %571 = vmatprep.subr.mxu0 0.0
        %572 = vmatpush1.msra.mxu0 %v475
        %573 = vmatprep.subr.mxu0 0.0
        %574 = vmatpush1.msra.mxu0 %v476
        %575 = vmatprep.subr.mxu0 0.0
        %576 = vmatpush1.msra.mxu0 %v477
        %577 = vmatprep.subr.mxu0 0.0
        %578 = vmatpush1.msra.mxu0 %v478
        %579 = vmatprep.subr.mxu0 0.0
        %580 = vmatpush1.msra.mxu0 %v479
        %581 = vmatprep.subr.mxu0 0.0
        %582 = vmatpush1.msra.mxu0 %v480
        %583 = vmatprep.subr.mxu0 0.0
        %584 = vmatpush1.msra.mxu0 0.0
        %585 = vmatprep.subr.mxu0 0.0
        %586 = vmatpush1.msra.mxu0 0.0
        %587 = vmatprep.subr.mxu0 0.0
        %588 = vmatpush1.msra.mxu0 0.0
        %589 = vmatprep.subr.mxu0 0.0
        %590 = vmatpush1.msra.mxu0 0.0
        %591 = vmatprep.subr.mxu0 0.0
        %592 = vmatpush1.msra.mxu0 0.0
        %593 = vmatprep.subr.mxu0 0.0
        %594 = vmatpush1.msra.mxu0 0.0
        %595 = vmatprep.subr.mxu0 0.0
        %596 = vmatpush1.msra.mxu0 0.0
        %597 = vmatprep.subr.mxu0 0.0
        %598 = vmatpush1.msra.mxu0 0.0
        %599 = vmatprep.subr.mxu0 0.0
        %600 = vmatpush1.msra.mxu0 0.0
        %601 = vmatprep.subr.mxu0 0.0
        %602 = vmatpush1.msra.mxu0 0.0
        %603 = vmatprep.subr.mxu0 0.0
        %604 = vmatpush1.msra.mxu0 0.0
        %605 = vmatprep.subr.mxu0 0.0
        %606 = vmatpush1.msra.mxu0 0.0
        %607 = vmatprep.subr.mxu0 0.0
        %608 = vmatpush1.msra.mxu0 0.0
        %609 = vmatprep.subr.mxu0 0.0
        %610 = vmatpush1.msra.mxu0 0.0
        %611 = vmatprep.subr.mxu0 0.0
        %612 = vmatpush1.msra.mxu0 0.0
        %613 = vmatprep.subr.mxu0 0.0
        %614 = vmatpush1.msra.mxu0 0.0
        %615 = vmatprep.subr.mxu0 0.0
        %616 = vmatpush1.msra.mxu0 0.0
        %617 = vmatprep.subr.mxu0 0.0
        %618 = vmatpush1.msra.mxu0 0.0
        %619 = vmatprep.subr.mxu0 0.0
        %620 = vmatpush1.msra.mxu0 0.0
        %621 = vmatprep.subr.mxu0 0.0
        %622 = vmatpush1.msra.mxu0 0.0
        %623 = vmatprep.subr.mxu0 0.0
        %624 = vmatpush1.msra.mxu0 0.0
        %625 = vmatprep.subr.mxu0 0.0
        %626 = vmatpush1.msra.mxu0 0.0
        %627 = vmatprep.subr.mxu0 0.0
        %628 = vmatpush1.msra.mxu0 0.0
        %629 = vmatprep.subr.mxu0 0.0
        %630 = vmatpush1.msra.mxu0 0.0
        %631 = vmatprep.mubr.f32.mxu0 0.0
        %632 = vmatmul.mubr.f32.gmra.mrb[0].mxu0 %v565
        %v633 = vpop.f32.mrb[0].mxu0
        %v634 = vadd.f32 %v561, %v633
        %v635 = vpop.f32.mrb[0].mxu0
        %636 = vdwg.mxu0
        %v637 = vld [vmem:[#allocation7] sm:$0xff]
        %v638 = vld [vmem:[%s8] sm:$0xff]
        %v639 = vld [vmem:[%s8 + $0x8] sm:$0xff]
        %v640 = vld [vmem:[%s8 + $0x10] sm:$0xff]
        %v641 = vld [vmem:[%s8 + $0x18] sm:$0xff]
        %v642 = vld [vmem:[%s8 + $0x20] sm:$0xff]
        %v643 = vld [vmem:[%s8 + $0x28] sm:$0xff]
        %v644 = vld [vmem:[%s8 + $0x30] sm:$0xff]
        %v645 = vld [vmem:[%s8 + $0x38] sm:$0xff]
        %v647 = vsel %vm490, %v637, 0
        %649 = vmatprep.subr.mxu0 0.0
        %650 = vmatpush1.msra.mxu0 %v638
        %651 = vmatprep.subr.mxu0 0.0
        %652 = vmatpush1.msra.mxu0 %v639
        %653 = vmatprep.subr.mxu0 0.0
        %654 = vmatpush1.msra.mxu0 %v640
        %655 = vmatprep.subr.mxu0 0.0
        %656 = vmatpush1.msra.mxu0 %v641
        %657 = vmatprep.subr.mxu0 0.0
        %658 = vmatpush1.msra.mxu0 %v642
        %659 = vmatprep.subr.mxu0 0.0
        %660 = vmatpush1.msra.mxu0 %v643
        %661 = vmatprep.subr.mxu0 0.0
        %662 = vmatpush1.msra.mxu0 %v644
        %663 = vmatprep.subr.mxu0 0.0
        %664 = vmatpush1.msra.mxu0 %v645
        %665 = vmatprep.subr.mxu0 0.0
        %666 = vmatpush1.msra.mxu0 0.0
        %667 = vmatprep.subr.mxu0 0.0
        %668 = vmatpush1.msra.mxu0 0.0
        %669 = vmatprep.subr.mxu0 0.0
        %670 = vmatpush1.msra.mxu0 0.0
        %671 = vmatprep.subr.mxu0 0.0
        %672 = vmatpush1.msra.mxu0 0.0
        %673 = vmatprep.subr.mxu0 0.0
        %674 = vmatpush1.msra.mxu0 0.0
        %675 = vmatprep.subr.mxu0 0.0
        %676 = vmatpush1.msra.mxu0 0.0
        %677 = vmatprep.subr.mxu0 0.0
        %678 = vmatpush1.msra.mxu0 0.0
        %679 = vmatprep.subr.mxu0 0.0
        %680 = vmatpush1.msra.mxu0 0.0
        %681 = vmatprep.subr.mxu0 0.0
        %682 = vmatpush1.msra.mxu0 0.0
        %683 = vmatprep.subr.mxu0 0.0
        %684 = vmatpush1.msra.mxu0 0.0
        %685 = vmatprep.subr.mxu0 0.0
        %686 = vmatpush1.msra.mxu0 0.0
        %687 = vmatprep.subr.mxu0 0.0
        %688 = vmatpush1.msra.mxu0 0.0
        %689 = vmatprep.subr.mxu0 0.0
        %690 = vmatpush1.msra.mxu0 0.0
        %691 = vmatprep.subr.mxu0 0.0
        %692 = vmatpush1.msra.mxu0 0.0
        %693 = vmatprep.subr.mxu0 0.0
        %694 = vmatpush1.msra.mxu0 0.0
        %695 = vmatprep.subr.mxu0 0.0
        %696 = vmatpush1.msra.mxu0 0.0
        %697 = vmatprep.subr.mxu0 0.0
        %698 = vmatpush1.msra.mxu0 0.0
        %699 = vmatprep.subr.mxu0 0.0
        %700 = vmatpush1.msra.mxu0 0.0
        %701 = vmatprep.subr.mxu0 0.0
        %702 = vmatpush1.msra.mxu0 0.0
        %703 = vmatprep.subr.mxu0 0.0
        %704 = vmatpush1.msra.mxu0 0.0
        %705 = vmatprep.subr.mxu0 0.0
        %706 = vmatpush1.msra.mxu0 0.0
        %707 = vmatprep.subr.mxu0 0.0
        %708 = vmatpush1.msra.mxu0 0.0
        %709 = vmatprep.subr.mxu0 0.0
        %710 = vmatpush1.msra.mxu0 0.0
        %711 = vmatprep.subr.mxu0 0.0
        %712 = vmatpush1.msra.mxu0 0.0
        %713 = vmatprep.mubr.f32.mxu0 0.0
        %714 = vmatmul.mubr.f32.gmra.mrb[0].mxu0 %v647
        %v715 = vpop.f32.mrb[0].mxu0
        %v716 = vadd.f32 0.0, %v715
        %v717 = vpop.f32.mrb[0].mxu0
        %718 = vdwg.mxu0
        %v719 = vadd.f32 %v634, %v716
        %v720 = vld [vmem:[%s9] sm:$0x1]
        %v722 = vlaneseq
        %v723 = vshrl.u32 %v722, 7
        %v724 = vsub.s32 0, %v723
        %v725 = vrot.slane %v720, %v724
        %v727 = vadd.f32 %v719, %v725
        %v728 = vmax.f32 %v727, 0.0
        %v729 = vld [vmem:[%s10] sm:$0xff]
        %v730 = vld [vmem:[%s10 + $0x8] sm:$0xff]
        %v731 = vld [vmem:[%s10 + $0x10] sm:$0xff]
        %v732 = vld [vmem:[%s10 + $0x18] sm:$0xff]
        %v733 = vld [vmem:[%s10 + $0x20] sm:$0xff]
        %v734 = vld [vmem:[%s10 + $0x28] sm:$0xff]
        %v735 = vld [vmem:[%s10 + $0x30] sm:$0xff]
        %v736 = vld [vmem:[%s10 + $0x38] sm:$0xff]
        %v737 = vld [vmem:[%s10 + $0x40] sm:$0xff]
        %v738 = vld [vmem:[%s10 + $0x48] sm:$0xff]
        %v739 = vld [vmem:[%s10 + $0x50] sm:$0xff]
        %v740 = vld [vmem:[%s10 + $0x58] sm:$0xff]
        %v741 = vld [vmem:[%s10 + $0x60] sm:$0xff]
        %v742 = vld [vmem:[%s10 + $0x68] sm:$0xff]
        %v743 = vld [vmem:[%s10 + $0x70] sm:$0xff]
        %v744 = vld [vmem:[%s10 + $0x78] sm:$0xff]
        %v745 = vld [vmem:[%s11] sm:$0x1]
        %v747 = vlaneseq
        %v748 = vshrl.u32 %v747, 7
        %v749 = vsub.s32 0, %v748
        %v750 = vrot.slane %v745, %v749
        %752 = vmatprep.subr.mxu0 0.0
        %753 = vmatpush1.msra.mxu0 %v729
        %754 = vmatprep.subr.mxu0 0.0
        %755 = vmatpush1.msra.mxu0 %v730
        %756 = vmatprep.subr.mxu0 0.0
        %757 = vmatpush1.msra.mxu0 %v731
        %758 = vmatprep.subr.mxu0 0.0
        %759 = vmatpush1.msra.mxu0 %v732
        %760 = vmatprep.subr.mxu0 0.0
        %761 = vmatpush1.msra.mxu0 %v733
        %762 = vmatprep.subr.mxu0 0.0
        %763 = vmatpush1.msra.mxu0 %v734
        %764 = vmatprep.subr.mxu0 0.0
        %765 = vmatpush1.msra.mxu0 %v735
        %766 = vmatprep.subr.mxu0 0.0
        %767 = vmatpush1.msra.mxu0 %v736
        %768 = vmatprep.subr.mxu0 0.0
        %769 = vmatpush1.msra.mxu0 %v737
        %770 = vmatprep.subr.mxu0 0.0
        %771 = vmatpush1.msra.mxu0 %v738
        %772 = vmatprep.subr.mxu0 0.0
        %773 = vmatpush1.msra.mxu0 %v739
        %774 = vmatprep.subr.mxu0 0.0
        %775 = vmatpush1.msra.mxu0 %v740
        %776 = vmatprep.subr.mxu0 0.0
        %777 = vmatpush1.msra.mxu0 %v741
        %778 = vmatprep.subr.mxu0 0.0
        %779 = vmatpush1.msra.mxu0 %v742
        %780 = vmatprep.subr.mxu0 0.0
        %781 = vmatpush1.msra.mxu0 %v743
        %782 = vmatprep.subr.mxu0 0.0
        %783 = vmatpush1.msra.mxu0 %v744
        %784 = vmatprep.subr.mxu0 0.0
        %785 = vmatpush1.msra.mxu0 0.0
        %786 = vmatprep.subr.mxu0 0.0
        %787 = vmatpush1.msra.mxu0 0.0
        %788 = vmatprep.subr.mxu0 0.0
        %789 = vmatpush1.msra.mxu0 0.0
        %790 = vmatprep.subr.mxu0 0.0
        %791 = vmatpush1.msra.mxu0 0.0
        %792 = vmatprep.subr.mxu0 0.0
        %793 = vmatpush1.msra.mxu0 0.0
        %794 = vmatprep.subr.mxu0 0.0
        %795 = vmatpush1.msra.mxu0 0.0
        %796 = vmatprep.subr.mxu0 0.0
        %797 = vmatpush1.msra.mxu0 0.0
        %798 = vmatprep.subr.mxu0 0.0
        %799 = vmatpush1.msra.mxu0 0.0
        %800 = vmatprep.subr.mxu0 0.0
        %801 = vmatpush1.msra.mxu0 0.0
        %802 = vmatprep.subr.mxu0 0.0
        %803 = vmatpush1.msra.mxu0 0.0
        %804 = vmatprep.subr.mxu0 0.0
        %805 = vmatpush1.msra.mxu0 0.0
        %806 = vmatprep.subr.mxu0 0.0
        %807 = vmatpush1.msra.mxu0 0.0
        %808 = vmatprep.subr.mxu0 0.0
        %809 = vmatpush1.msra.mxu0 0.0
        %810 = vmatprep.subr.mxu0 0.0
        %811 = vmatpush1.msra.mxu0 0.0
        %812 = vmatprep.subr.mxu0 0.0
        %813 = vmatpush1.msra.mxu0 0.0
        %814 = vmatprep.subr.mxu0 0.0
        %815 = vmatpush1.msra.mxu0 0.0
        %816 = vmatprep.mubr.f32.mxu0 0.0
        %817 = vmatmul.mubr.f32.gmra.mrb[0].mxu0 %v728
        %v818 = vpop.f32.mrb[0].mxu0
        %v819 = vadd.f32 %v750, %v818
        %v820 = vpop.f32.mrb[0].mxu0
        %821 = vdwg.mxu0
        %822 = vst [vmem:[%s327] sm:$0xff] %v819
        %s823 = sand.u32 %s237, 1
        %s824 = scalar_lea.sflag [#allocation13], %s823
        %s825 = sand.u32 %s237, 1
        %s826 = smul.addr %s825, 8
        %s827 = scalar_lea.vmem [#allocation12], %s826
        // Predicated region
        $region64: #{tpu_custom_call.1} parent=55 // pred_check
          %p828 = pneg %p247
        $region65: #{tpu_custom_call.1} parent=55 // pred_check_branch
          %830 = sbr.rel (%p828) target = $region67
        $region66: #{tpu_custom_call.1} parent=55 // pred_region
          %s832 = ssub.s32 128, 128
          %833 = vsyncadd %s824, %s832
          %s834 = smul.addr %s40, 128
          %s835 = scalar_lea.hbm %s12, %s834
          %s837 = sshll.u32 %s827, 4
          %s838 = int_to_ptr.vmem [resolvable:$true] %s837
          %840 = dma.vmem_to_hbm [thread:$0]  %s838, 128, %s835, %s824
        $region67: #{tpu_custom_call.1} parent=55 // pred_fallthru
          _
      $region56: #{tpu_custom_call.1} parent=5 // pred_fallthru
        _
      %p841 = scmp.le.s32.totalorder 2, %s35
      // Predicated region
      $region68: #{tpu_custom_call.1} parent=5 // pred_check
        %p842 = pneg %p841
      $region69: #{tpu_custom_call.1} parent=5 // pred_check_branch
        %844 = sbr.rel (%p842) target = $region71
      $region70: #{tpu_custom_call.1} parent=5 // pred_region
        %s845 = ssub.s32 %s35, 2
        // Predicated region
        $region72: #{tpu_custom_call.1} parent=70 // pred_check
          %p846 = pneg %p253
        $region73: #{tpu_custom_call.1} parent=70 // pred_check_branch
          %848 = sbr.rel (%p846) target = $region75
        $region74: #{tpu_custom_call.1} parent=70 // pred_region
          %s849 = sand.u32 %s238, 1
          %s850 = scalar_lea.sflag [#allocation13], %s849
          %s851 = sand.u32 %s238, 1
          %s852 = smul.addr %s851, 8
          %s853 = scalar_lea.vmem [#allocation12], %s852
          %854 = dma.done %s850, 128
        $region75: #{tpu_custom_call.1} parent=70 // pred_fallthru
          _
      $region71: #{tpu_custom_call.1} parent=5 // pred_fallthru
        _
    $region6: #{tpu_custom_call.1} parent=1 // loop_footer
      %s39 = sadd.s32 1, %s35
    $region7: #{tpu_custom_call.1} parent=1 // loop_footer_branch
      %34 = sbr.rel target = $region3
    $region8: #{tpu_custom_call.1} parent=1 // loop_exit
      _
    %855 = vsyncpa [#allocation13], 1
    %s856 = scalar_lea.sflag [#allocation13], 1
    %857 = vsyncpa %s856, 1

</llo_original>
